<compile_context>
chip_gen: v6e
topology: v6e:2x2x1
jax: 0.10.0
libtpu: 0.0.40
codegen_flags: <defaults>
</compile_context>

<pallas_src>
import functools

import jax
import jax.numpy as jnp
from jax.experimental import pallas as pl
from jax.experimental.pallas import tpu as pltpu


# ----------------------------------------------------------------------------
# Pallas kernel: whole-sequence LSTM recurrence + fused softmax output
# ----------------------------------------------------------------------------
def _lstm_seq_kernel(x_ref, h0_ref, c0_ref,
                     wx_ref, wh_ref, b4_ref,
                     wout_ref, bout_ref,
                     h_out_ref, c_out_ref, sm_ref,
                     xg_ref,
                     *, seq_len, batch, hp):
    # --- Preamble: input-side gate contribution for ALL timesteps at once. ---
    # (T*B, I) @ (I, 4*HP) + (1, 4*HP) -> one well-shaped MXU matmul instead of
    # T separate M=1 matmuls; also moves the bias add off the serial path.
    xg_ref[...] = (jnp.dot(x_ref[...], wx_ref[...],
                           preferred_element_type=jnp.float32)
                   + b4_ref[...])

    wh = wh_ref[...]          # (HP, 4*HP) recurrent weights, resident in vregs/VMEM

    def step(t, carry):
        h_prev, c_prev = carry                                   # (B, HP) each
        gx = xg_ref[pl.ds(t * batch, batch), :]                  # (B, 4*HP) precomputed
        gates = gx + jnp.dot(h_prev, wh,
                             preferred_element_type=jnp.float32)  # (B, 4*HP)

        # Each gate sits in its own 128-lane group -> tile-aligned slices.
        f = jax.nn.sigmoid(gates[:, 0 * hp:1 * hp])   # forget gate
        i = jax.nn.sigmoid(gates[:, 1 * hp:2 * hp])   # input (add) gate
        g = jnp.tanh(gates[:, 2 * hp:3 * hp])         # candidate
        o = jax.nn.sigmoid(gates[:, 3 * hp:4 * hp])   # output gate

        c_new = c_prev * f + g * i
        h_new = jnp.tanh(c_new) * o
        return h_new, c_new

    h_fin, c_fin = jax.lax.fori_loop(
        0, seq_len, step, (h0_ref[...], c0_ref[...]), unroll=True)

    h_out_ref[...] = h_fin
    c_out_ref[...] = c_fin

    # --- Fused epilogue (LSTM.getOut()): projection + softmax, exact math. ---
    logits = (jnp.dot(h_fin, wout_ref[...], preferred_element_type=jnp.float32)
              + bout_ref[...])
    m = jnp.max(logits, axis=1, keepdims=True)
    e = jnp.exp(logits - m)
    sm_ref[...] = e / jnp.sum(e, axis=1, keepdims=True)


# ----------------------------------------------------------------------------
# Wrapper
# ----------------------------------------------------------------------------
def lstm_forward(x_seq, h0, c0, packed, hidden_size):
    """Runs T LSTM.forward() steps + LSTM.getOut() in one pallas_call.

    x_seq : (T, B, I)   per-timestep inputs
    h0,c0 : (B, H)      initial recurrent state
    Returns (h_T, c_T, softmax_out).
    """
    T, B, I = x_seq.shape
    H = hidden_size
    HP = 128                                  # lane-padded per-gate width
    O = packed["b_out"].shape[1]

    x_flat = x_seq.reshape(T * B, I)
    # Lane-pad the carried state to one full lane tile (pad lanes stay 0).
    h0p = jnp.zeros((B, HP), jnp.float32).at[:, :H].set(h0)
    c0p = jnp.zeros((B, HP), jnp.float32).at[:, :H].set(c0)

    kernel = functools.partial(_lstm_seq_kernel, seq_len=T, batch=B, hp=HP)

    h_slab, c_slab, sm = pl.pallas_call(
        kernel,
        # No grid: everything (tiny) lives whole in VMEM for the full sequence.
        out_shape=(jax.ShapeDtypeStruct((B, HP), jnp.float32),
                   jax.ShapeDtypeStruct((B, HP), jnp.float32),
                   jax.ShapeDtypeStruct((B, O), jnp.float32)),
        scratch_shapes=[pltpu.VMEM((T * B, 4 * HP), jnp.float32)],  # hoisted x-gates
        compiler_params=pltpu.CompilerParams(
            vmem_limit_bytes=32 * 1024 * 1024),
    )(x_flat, h0p, c0p,
      packed["wx"], packed["wh"], packed["b4"],
      packed["w_out"], packed["b_out"])

    return h_slab[:, :H], c_slab[:, :H], sm


# ----------------------------------------------------------------------------
# Deterministic parameter init (PyTorch nn.Linear shapes, stored transposed)
# ----------------------------------------------------------------------------
def init_params(key, input_size, hidden_size, output_size):
    ks = jax.random.split(key, 10)
    ih = input_size + hidden_size

    def lin(kw, kb, fan_in, fan_out):
        bound = 1.0 / jnp.sqrt(fan_in)
        w = jax.random.uniform(kw, (fan_in, fan_out), jnp.float32, -bound, bound)
        b = jax.random.uniform(kb, (1, fan_out), jnp.float32, -bound, bound)
        return w, b

    wf, bf = lin(ks[0], ks[1], ih, hidden_size)
    wif, bif = lin(ks[2], ks[3], ih, hidden_size)
    wic, bic = lin(ks[4], ks[5], ih, hidden_size)
    wo, bo = lin(ks[6], ks[7], ih, hidden_size)
    w_out, b_out = lin(ks[8], ks[9], hidden_size, output_size)
    return dict(wf=wf, bf=bf, wif=wif, bif=bif, wic=wic, bic=bic,
                wo=wo, bo=bo, w_out=w_out, b_out=b_out)


def pack_params(p, input_size, hidden_size, hp=128):
    """Fuse the 4 gate Linears into lane-padded slabs.

    Gate g occupies lanes [g*hp, g*hp + H); padding lanes/rows are zero so the
    recurrence keeps exact zeros in the padded positions.
    Gate order: [forget, input_forget, candidate, output].
    """
    I, H = input_size, hidden_size
    O = p["w_out"].shape[1]
    wx = jnp.zeros((I, 4 * hp), jnp.float32)
    wh = jnp.zeros((hp, 4 * hp), jnp.float32)
    b4 = jnp.zeros((1, 4 * hp), jnp.float32)
    for g, (wn, bn) in enumerate([("wf", "bf"), ("wif", "bif"),
                                  ("wic", "bic"), ("wo", "bo")]):
        w = p[wn]                                     # (I+H, H)
        wx = wx.at[:, g * hp:g * hp + H].set(w[:I])
        wh = wh.at[:H, g * hp:g * hp + H].set(w[I:])
        b4 = b4.at[:, g * hp:g * hp + H].set(p[bn])
    w_out = jnp.zeros((hp, O), jnp.float32).at[:H].set(p["w_out"])
    return dict(wx=wx, wh=wh, b4=b4, w_out=w_out, b_out=p["b_out"])


# ----------------------------------------------------------------------------
# Pure-JAX reference (unfused, mirrors the PyTorch module exactly)
# ----------------------------------------------------------------------------
def ref_cell_step(x, h, c, p):
    xh = jnp.concatenate([x, h], axis=1)
    f = jax.nn.sigmoid(xh @ p["wf"] + p["bf"])
    c = c * f
    g = jnp.tanh(xh @ p["wic"] + p["bic"])
    i = jax.nn.sigmoid(xh @ p["wif"] + p["bif"])
    c = c + g * i
    o = jax.nn.sigmoid(xh @ p["wo"] + p["bo"])
    h = jnp.tanh(c) * o
    return h, c


def ref_get_out(h, p):
    return jax.nn.softmax(h @ p["w_out"] + p["b_out"], axis=1)


# ----------------------------------------------------------------------------
if __name__ == "__main__":
    # Module-consistent small shapes: hidden_size=64 (module constant),
    # batch=1 recurrent state (h_s/c_s are (1, hidden)), char-vocab-sized I/O.
    input_size = 65      # stands in for vocab_size
    hidden_size = 64
    output_size = 65
    batch = 1
    seq_len = 8

    key = jax.random.PRNGKey(0)
    k_x, k_p = jax.random.split(key)
    params = init_params(k_p, input_size, hidden_size, output_size)
    packed = pack_params(params, input_size, hidden_size)

    x_seq = jax.random.normal(k_x, (seq_len, batch, input_size), jnp.float32)
    h0 = jnp.zeros((batch, hidden_size), jnp.float32)
    c0 = jnp.zeros((batch, hidden_size), jnp.float32)

    # Fused Pallas kernel: whole sequence + final softmax in one call.
    h_f, c_f, out = lstm_forward(x_seq, h0, c0, packed, hidden_size)
    jax.block_until_ready((h_f, c_f, out))

    # Correctness vs pure-JAX unfused reference.
    h_r, c_r = h0, c0
    for t in range(seq_len):
        h_r, c_r = ref_cell_step(x_seq[t], h_r, c_r, params)
    out_r = ref_get_out(h_r, params)

    assert jnp.allclose(h_f, h_r, atol=1e-4), "h mismatch"
    assert jnp.allclose(c_f, c_r, atol=1e-4), "c mismatch"
    assert jnp.allclose(out, out_r, atol=1e-4), "softmax output mismatch"

    print("KERNEL_OK")
</pallas_src>

<mosaic_0001>
module attributes {stable_mosaic.version = 11 : i64} {
  func.func @_lstm_seq_kernel(%arg0: memref<8x65xf32, #tpu.memory_space<vmem>>, %arg1: memref<1x128xf32, #tpu.memory_space<vmem>>, %arg2: memref<1x128xf32, #tpu.memory_space<vmem>>, %arg3: memref<65x512xf32, #tpu.memory_space<vmem>>, %arg4: memref<128x512xf32, #tpu.memory_space<vmem>>, %arg5: memref<1x512xf32, #tpu.memory_space<vmem>>, %arg6: memref<128x65xf32, #tpu.memory_space<vmem>>, %arg7: memref<1x65xf32, #tpu.memory_space<vmem>>, %arg8: memref<1x128xf32, #tpu.memory_space<vmem>>, %arg9: memref<1x128xf32, #tpu.memory_space<vmem>>, %arg10: memref<1x65xf32, #tpu.memory_space<vmem>>, %arg11: memref<8x512xf32, #tpu.memory_space<vmem>>) attributes {dimension_semantics = [], scalar_prefetch = 0 : i64, scratch_operands = 1 : i64, tpu.core_type = #tpu.core_type<tc>} {
    %c0 = arith.constant 0 : index
    %c0_0 = arith.constant 0 : index
    %0 = vector.load %arg0[%c0, %c0_0] : memref<8x65xf32, #tpu.memory_space<vmem>>, vector<8x65xf32>
    %c0_1 = arith.constant 0 : index
    %c0_2 = arith.constant 0 : index
    %1 = vector.load %arg3[%c0_1, %c0_2] : memref<65x512xf32, #tpu.memory_space<vmem>>, vector<65x512xf32>
    %cst = arith.constant dense<0.000000e+00> : vector<8x512xf32>
    %2 = tpu.matmul %0, %1, %cst {dimension_numbers = #tpu.dot_dimension_numbers<[1], [0], [0], [1], [0, 0, 1, 1], [], []>} : vector<8x65xf32>, vector<65x512xf32>, vector<8x512xf32> -> vector<8x512xf32>
    %c0_3 = arith.constant 0 : index
    %c0_4 = arith.constant 0 : index
    %3 = vector.load %arg5[%c0_3, %c0_4] : memref<1x512xf32, #tpu.memory_space<vmem>>, vector<1x512xf32>
    %4 = vector.broadcast %3 : vector<1x512xf32> to vector<8x512xf32>
    %5 = arith.addf %2, %4 : vector<8x512xf32>
    %c0_5 = arith.constant 0 : index
    %c0_6 = arith.constant 0 : index
    %6 = vector.load %arg11[%c0_5, %c0_6] : memref<8x512xf32, #tpu.memory_space<vmem>>, vector<8x512xf32>
    tpu.vector_store %arg11[%c0_5, %c0_6], %5 {strides = array<i32>} : memref<8x512xf32, #tpu.memory_space<vmem>>, vector<8x512xf32>,
    %c0_7 = arith.constant 0 : index
    %c0_8 = arith.constant 0 : index
    %7 = vector.load %arg4[%c0_7, %c0_8] : memref<128x512xf32, #tpu.memory_space<vmem>>, vector<128x512xf32>
    %c0_9 = arith.constant 0 : index
    %c0_10 = arith.constant 0 : index
    %8 = vector.load %arg1[%c0_9, %c0_10] : memref<1x128xf32, #tpu.memory_space<vmem>>, vector<1x128xf32>
    %c0_11 = arith.constant 0 : index
    %c0_12 = arith.constant 0 : index
    %9 = vector.load %arg2[%c0_11, %c0_12] : memref<1x128xf32, #tpu.memory_space<vmem>>, vector<1x128xf32>
    %c0_i32 = arith.constant 0 : i32
    %c1_i32 = arith.constant 1 : i32
    %10 = arith.muli %c0_i32, %c1_i32 : i32
    %11 = arith.index_cast %10 : i32 to index
    %c0_13 = arith.constant 0 : index
    %12 = vector.load %arg11[%11, %c0_13] : memref<8x512xf32, #tpu.memory_space<vmem>>, vector<1x512xf32>
    %cst_14 = arith.constant dense<0.000000e+00> : vector<1x512xf32>
    %13 = tpu.matmul %8, %7, %cst_14 {dimension_numbers = #tpu.dot_dimension_numbers<[1], [0], [0], [1], [0, 0, 1, 1], [], []>} : vector<1x128xf32>, vector<128x512xf32>, vector<1x512xf32> -> vector<1x512xf32>
    %14 = arith.addf %12, %13 : vector<1x512xf32>
    %15 = vector.extract_strided_slice %14 {offsets = [0, 0], sizes = [1, 128], strides = [1, 1]} : vector<1x512xf32> to vector<1x128xf32>
    %16 = arith.negf %15 : vector<1x128xf32>
    %17 = math.exp %16 : vector<1x128xf32>
    %cst_15 = arith.constant 1.000000e+00 : f32
    %18 = vector.broadcast %cst_15 : f32 to vector<1x128xf32>
    %19 = arith.addf %18, %17 : vector<1x128xf32>
    %20 = arith.divf %18, %19 : vector<1x128xf32>
    %21 = vector.extract_strided_slice %14 {offsets = [0, 128], sizes = [1, 128], strides = [1, 1]} : vector<1x512xf32> to vector<1x128xf32>
    %22 = arith.negf %21 : vector<1x128xf32>
    %23 = math.exp %22 : vector<1x128xf32>
    %cst_16 = arith.constant 1.000000e+00 : f32
    %24 = vector.broadcast %cst_16 : f32 to vector<1x128xf32>
    %25 = arith.addf %24, %23 : vector<1x128xf32>
    %26 = arith.divf %24, %25 : vector<1x128xf32>
    %27 = vector.extract_strided_slice %14 {offsets = [0, 256], sizes = [1, 128], strides = [1, 1]} : vector<1x512xf32> to vector<1x128xf32>
    %28 = math.tanh %27 : vector<1x128xf32>
    %29 = vector.extract_strided_slice %14 {offsets = [0, 384], sizes = [1, 128], strides = [1, 1]} : vector<1x512xf32> to vector<1x128xf32>
    %30 = arith.negf %29 : vector<1x128xf32>
    %31 = math.exp %30 : vector<1x128xf32>
    %cst_17 = arith.constant 1.000000e+00 : f32
    %32 = vector.broadcast %cst_17 : f32 to vector<1x128xf32>
    %33 = arith.addf %32, %31 : vector<1x128xf32>
    %34 = arith.divf %32, %33 : vector<1x128xf32>
    %35 = arith.mulf %9, %20 : vector<1x128xf32>
    %36 = arith.mulf %28, %26 : vector<1x128xf32>
    %37 = arith.addf %35, %36 : vector<1x128xf32>
    %38 = math.tanh %37 : vector<1x128xf32>
    %39 = arith.mulf %38, %34 : vector<1x128xf32>
    %c1_i32_18 = arith.constant 1 : i32
    %c1_i32_19 = arith.constant 1 : i32
    %40 = arith.muli %c1_i32_18, %c1_i32_19 : i32
    %41 = arith.index_cast %40 : i32 to index
    %c0_20 = arith.constant 0 : index
    %42 = vector.load %arg11[%41, %c0_20] : memref<8x512xf32, #tpu.memory_space<vmem>>, vector<1x512xf32>
    %cst_21 = arith.constant dense<0.000000e+00> : vector<1x512xf32>
    %43 = tpu.matmul %39, %7, %cst_21 {dimension_numbers = #tpu.dot_dimension_numbers<[1], [0], [0], [1], [0, 0, 1, 1], [], []>} : vector<1x128xf32>, vector<128x512xf32>, vector<1x512xf32> -> vector<1x512xf32>
    %44 = arith.addf %42, %43 : vector<1x512xf32>
    %45 = vector.extract_strided_slice %44 {offsets = [0, 0], sizes = [1, 128], strides = [1, 1]} : vector<1x512xf32> to vector<1x128xf32>
    %46 = arith.negf %45 : vector<1x128xf32>
    %47 = math.exp %46 : vector<1x128xf32>
    %cst_22 = arith.constant 1.000000e+00 : f32
    %48 = vector.broadcast %cst_22 : f32 to vector<1x128xf32>
    %49 = arith.addf %48, %47 : vector<1x128xf32>
    %50 = arith.divf %48, %49 : vector<1x128xf32>
    %51 = vector.extract_strided_slice %44 {offsets = [0, 128], sizes = [1, 128], strides = [1, 1]} : vector<1x512xf32> to vector<1x128xf32>
    %52 = arith.negf %51 : vector<1x128xf32>
    %53 = math.exp %52 : vector<1x128xf32>
    %cst_23 = arith.constant 1.000000e+00 : f32
    %54 = vector.broadcast %cst_23 : f32 to vector<1x128xf32>
    %55 = arith.addf %54, %53 : vector<1x128xf32>
    %56 = arith.divf %54, %55 : vector<1x128xf32>
    %57 = vector.extract_strided_slice %44 {offsets = [0, 256], sizes = [1, 128], strides = [1, 1]} : vector<1x512xf32> to vector<1x128xf32>
    %58 = math.tanh %57 : vector<1x128xf32>
    %59 = vector.extract_strided_slice %44 {offsets = [0, 384], sizes = [1, 128], strides = [1, 1]} : vector<1x512xf32> to vector<1x128xf32>
    %60 = arith.negf %59 : vector<1x128xf32>
    %61 = math.exp %60 : vector<1x128xf32>
    %cst_24 = arith.constant 1.000000e+00 : f32
    %62 = vector.broadcast %cst_24 : f32 to vector<1x128xf32>
    %63 = arith.addf %62, %61 : vector<1x128xf32>
    %64 = arith.divf %62, %63 : vector<1x128xf32>
    %65 = arith.mulf %37, %50 : vector<1x128xf32>
    %66 = arith.mulf %58, %56 : vector<1x128xf32>
    %67 = arith.addf %65, %66 : vector<1x128xf32>
    %68 = math.tanh %67 : vector<1x128xf32>
    %69 = arith.mulf %68, %64 : vector<1x128xf32>
    %c2_i32 = arith.constant 2 : i32
    %c1_i32_25 = arith.constant 1 : i32
    %70 = arith.muli %c2_i32, %c1_i32_25 : i32
    %71 = arith.index_cast %70 : i32 to index
    %c0_26 = arith.constant 0 : index
    %72 = vector.load %arg11[%71, %c0_26] : memref<8x512xf32, #tpu.memory_space<vmem>>, vector<1x512xf32>
    %cst_27 = arith.constant dense<0.000000e+00> : vector<1x512xf32>
    %73 = tpu.matmul %69, %7, %cst_27 {dimension_numbers = #tpu.dot_dimension_numbers<[1], [0], [0], [1], [0, 0, 1, 1], [], []>} : vector<1x128xf32>, vector<128x512xf32>, vector<1x512xf32> -> vector<1x512xf32>
    %74 = arith.addf %72, %73 : vector<1x512xf32>
    %75 = vector.extract_strided_slice %74 {offsets = [0, 0], sizes = [1, 128], strides = [1, 1]} : vector<1x512xf32> to vector<1x128xf32>
    %76 = arith.negf %75 : vector<1x128xf32>
    %77 = math.exp %76 : vector<1x128xf32>
    %cst_28 = arith.constant 1.000000e+00 : f32
    %78 = vector.broadcast %cst_28 : f32 to vector<1x128xf32>
    %79 = arith.addf %78, %77 : vector<1x128xf32>
    %80 = arith.divf %78, %79 : vector<1x128xf32>
    %81 = vector.extract_strided_slice %74 {offsets = [0, 128], sizes = [1, 128], strides = [1, 1]} : vector<1x512xf32> to vector<1x128xf32>
    %82 = arith.negf %81 : vector<1x128xf32>
    %83 = math.exp %82 : vector<1x128xf32>
    %cst_29 = arith.constant 1.000000e+00 : f32
    %84 = vector.broadcast %cst_29 : f32 to vector<1x128xf32>
    %85 = arith.addf %84, %83 : vector<1x128xf32>
    %86 = arith.divf %84, %85 : vector<1x128xf32>
    %87 = vector.extract_strided_slice %74 {offsets = [0, 256], sizes = [1, 128], strides = [1, 1]} : vector<1x512xf32> to vector<1x128xf32>
    %88 = math.tanh %87 : vector<1x128xf32>
    %89 = vector.extract_strided_slice %74 {offsets = [0, 384], sizes = [1, 128], strides = [1, 1]} : vector<1x512xf32> to vector<1x128xf32>
    %90 = arith.negf %89 : vector<1x128xf32>
    %91 = math.exp %90 : vector<1x128xf32>
    %cst_30 = arith.constant 1.000000e+00 : f32
    %92 = vector.broadcast %cst_30 : f32 to vector<1x128xf32>
    %93 = arith.addf %92, %91 : vector<1x128xf32>
    %94 = arith.divf %92, %93 : vector<1x128xf32>
    %95 = arith.mulf %67, %80 : vector<1x128xf32>
    %96 = arith.mulf %88, %86 : vector<1x128xf32>
    %97 = arith.addf %95, %96 : vector<1x128xf32>
    %98 = math.tanh %97 : vector<1x128xf32>
    %99 = arith.mulf %98, %94 : vector<1x128xf32>
    %c3_i32 = arith.constant 3 : i32
    %c1_i32_31 = arith.constant 1 : i32
    %100 = arith.muli %c3_i32, %c1_i32_31 : i32
    %101 = arith.index_cast %100 : i32 to index
    %c0_32 = arith.constant 0 : index
    %102 = vector.load %arg11[%101, %c0_32] : memref<8x512xf32, #tpu.memory_space<vmem>>, vector<1x512xf32>
    %cst_33 = arith.constant dense<0.000000e+00> : vector<1x512xf32>
    %103 = tpu.matmul %99, %7, %cst_33 {dimension_numbers = #tpu.dot_dimension_numbers<[1], [0], [0], [1], [0, 0, 1, 1], [], []>} : vector<1x128xf32>, vector<128x512xf32>, vector<1x512xf32> -> vector<1x512xf32>
    %104 = arith.addf %102, %103 : vector<1x512xf32>
    %105 = vector.extract_strided_slice %104 {offsets = [0, 0], sizes = [1, 128], strides = [1, 1]} : vector<1x512xf32> to vector<1x128xf32>
    %106 = arith.negf %105 : vector<1x128xf32>
    %107 = math.exp %106 : vector<1x128xf32>
    %cst_34 = arith.constant 1.000000e+00 : f32
    %108 = vector.broadcast %cst_34 : f32 to vector<1x128xf32>
    %109 = arith.addf %108, %107 : vector<1x128xf32>
    %110 = arith.divf %108, %109 : vector<1x128xf32>
    %111 = vector.extract_strided_slice %104 {offsets = [0, 128], sizes = [1, 128], strides = [1, 1]} : vector<1x512xf32> to vector<1x128xf32>
    %112 = arith.negf %111 : vector<1x128xf32>
    %113 = math.exp %112 : vector<1x128xf32>
    %cst_35 = arith.constant 1.000000e+00 : f32
    %114 = vector.broadcast %cst_35 : f32 to vector<1x128xf32>
    %115 = arith.addf %114, %113 : vector<1x128xf32>
    %116 = arith.divf %114, %115 : vector<1x128xf32>
    %117 = vector.extract_strided_slice %104 {offsets = [0, 256], sizes = [1, 128], strides = [1, 1]} : vector<1x512xf32> to vector<1x128xf32>
    %118 = math.tanh %117 : vector<1x128xf32>
    %119 = vector.extract_strided_slice %104 {offsets = [0, 384], sizes = [1, 128], strides = [1, 1]} : vector<1x512xf32> to vector<1x128xf32>
    %120 = arith.negf %119 : vector<1x128xf32>
    %121 = math.exp %120 : vector<1x128xf32>
    %cst_36 = arith.constant 1.000000e+00 : f32
    %122 = vector.broadcast %cst_36 : f32 to vector<1x128xf32>
    %123 = arith.addf %122, %121 : vector<1x128xf32>
    %124 = arith.divf %122, %123 : vector<1x128xf32>
    %125 = arith.mulf %97, %110 : vector<1x128xf32>
    %126 = arith.mulf %118, %116 : vector<1x128xf32>
    %127 = arith.addf %125, %126 : vector<1x128xf32>
    %128 = math.tanh %127 : vector<1x128xf32>
    %129 = arith.mulf %128, %124 : vector<1x128xf32>
    %c4_i32 = arith.constant 4 : i32
    %c1_i32_37 = arith.constant 1 : i32
    %130 = arith.muli %c4_i32, %c1_i32_37 : i32
    %131 = arith.index_cast %130 : i32 to index
    %c0_38 = arith.constant 0 : index
    %132 = vector.load %arg11[%131, %c0_38] : memref<8x512xf32, #tpu.memory_space<vmem>>, vector<1x512xf32>
    %cst_39 = arith.constant dense<0.000000e+00> : vector<1x512xf32>
    %133 = tpu.matmul %129, %7, %cst_39 {dimension_numbers = #tpu.dot_dimension_numbers<[1], [0], [0], [1], [0, 0, 1, 1], [], []>} : vector<1x128xf32>, vector<128x512xf32>, vector<1x512xf32> -> vector<1x512xf32>
    %134 = arith.addf %132, %133 : vector<1x512xf32>
    %135 = vector.extract_strided_slice %134 {offsets = [0, 0], sizes = [1, 128], strides = [1, 1]} : vector<1x512xf32> to vector<1x128xf32>
    %136 = arith.negf %135 : vector<1x128xf32>
    %137 = math.exp %136 : vector<1x128xf32>
    %cst_40 = arith.constant 1.000000e+00 : f32
    %138 = vector.broadcast %cst_40 : f32 to vector<1x128xf32>
    %139 = arith.addf %138, %137 : vector<1x128xf32>
    %140 = arith.divf %138, %139 : vector<1x128xf32>
    %141 = vector.extract_strided_slice %134 {offsets = [0, 128], sizes = [1, 128], strides = [1, 1]} : vector<1x512xf32> to vector<1x128xf32>
    %142 = arith.negf %141 : vector<1x128xf32>
    %143 = math.exp %142 : vector<1x128xf32>
    %cst_41 = arith.constant 1.000000e+00 : f32
    %144 = vector.broadcast %cst_41 : f32 to vector<1x128xf32>
    %145 = arith.addf %144, %143 : vector<1x128xf32>
    %146 = arith.divf %144, %145 : vector<1x128xf32>
    %147 = vector.extract_strided_slice %134 {offsets = [0, 256], sizes = [1, 128], strides = [1, 1]} : vector<1x512xf32> to vector<1x128xf32>
    %148 = math.tanh %147 : vector<1x128xf32>
    %149 = vector.extract_strided_slice %134 {offsets = [0, 384], sizes = [1, 128], strides = [1, 1]} : vector<1x512xf32> to vector<1x128xf32>
    %150 = arith.negf %149 : vector<1x128xf32>
    %151 = math.exp %150 : vector<1x128xf32>
    %cst_42 = arith.constant 1.000000e+00 : f32
    %152 = vector.broadcast %cst_42 : f32 to vector<1x128xf32>
    %153 = arith.addf %152, %151 : vector<1x128xf32>
    %154 = arith.divf %152, %153 : vector<1x128xf32>
    %155 = arith.mulf %127, %140 : vector<1x128xf32>
    %156 = arith.mulf %148, %146 : vector<1x128xf32>
    %157 = arith.addf %155, %156 : vector<1x128xf32>
    %158 = math.tanh %157 : vector<1x128xf32>
    %159 = arith.mulf %158, %154 : vector<1x128xf32>
    %c5_i32 = arith.constant 5 : i32
    %c1_i32_43 = arith.constant 1 : i32
    %160 = arith.muli %c5_i32, %c1_i32_43 : i32
    %161 = arith.index_cast %160 : i32 to index
    %c0_44 = arith.constant 0 : index
    %162 = vector.load %arg11[%161, %c0_44] : memref<8x512xf32, #tpu.memory_space<vmem>>, vector<1x512xf32>
    %cst_45 = arith.constant dense<0.000000e+00> : vector<1x512xf32>
    %163 = tpu.matmul %159, %7, %cst_45 {dimension_numbers = #tpu.dot_dimension_numbers<[1], [0], [0], [1], [0, 0, 1, 1], [], []>} : vector<1x128xf32>, vector<128x512xf32>, vector<1x512xf32> -> vector<1x512xf32>
    %164 = arith.addf %162, %163 : vector<1x512xf32>
    %165 = vector.extract_strided_slice %164 {offsets = [0, 0], sizes = [1, 128], strides = [1, 1]} : vector<1x512xf32> to vector<1x128xf32>
    %166 = arith.negf %165 : vector<1x128xf32>
    %167 = math.exp %166 : vector<1x128xf32>
    %cst_46 = arith.constant 1.000000e+00 : f32
    %168 = vector.broadcast %cst_46 : f32 to vector<1x128xf32>
    %169 = arith.addf %168, %167 : vector<1x128xf32>
    %170 = arith.divf %168, %169 : vector<1x128xf32>
    %171 = vector.extract_strided_slice %164 {offsets = [0, 128], sizes = [1, 128], strides = [1, 1]} : vector<1x512xf32> to vector<1x128xf32>
    %172 = arith.negf %171 : vector<1x128xf32>
    %173 = math.exp %172 : vector<1x128xf32>
    %cst_47 = arith.constant 1.000000e+00 : f32
    %174 = vector.broadcast %cst_47 : f32 to vector<1x128xf32>
    %175 = arith.addf %174, %173 : vector<1x128xf32>
    %176 = arith.divf %174, %175 : vector<1x128xf32>
    %177 = vector.extract_strided_slice %164 {offsets = [0, 256], sizes = [1, 128], strides = [1, 1]} : vector<1x512xf32> to vector<1x128xf32>
    %178 = math.tanh %177 : vector<1x128xf32>
    %179 = vector.extract_strided_slice %164 {offsets = [0, 384], sizes = [1, 128], strides = [1, 1]} : vector<1x512xf32> to vector<1x128xf32>
    %180 = arith.negf %179 : vector<1x128xf32>
    %181 = math.exp %180 : vector<1x128xf32>
    %cst_48 = arith.constant 1.000000e+00 : f32
    %182 = vector.broadcast %cst_48 : f32 to vector<1x128xf32>
    %183 = arith.addf %182, %181 : vector<1x128xf32>
    %184 = arith.divf %182, %183 : vector<1x128xf32>
    %185 = arith.mulf %157, %170 : vector<1x128xf32>
    %186 = arith.mulf %178, %176 : vector<1x128xf32>
    %187 = arith.addf %185, %186 : vector<1x128xf32>
    %188 = math.tanh %187 : vector<1x128xf32>
    %189 = arith.mulf %188, %184 : vector<1x128xf32>
    %c6_i32 = arith.constant 6 : i32
    %c1_i32_49 = arith.constant 1 : i32
    %190 = arith.muli %c6_i32, %c1_i32_49 : i32
    %191 = arith.index_cast %190 : i32 to index
    %c0_50 = arith.constant 0 : index
    %192 = vector.load %arg11[%191, %c0_50] : memref<8x512xf32, #tpu.memory_space<vmem>>, vector<1x512xf32>
    %cst_51 = arith.constant dense<0.000000e+00> : vector<1x512xf32>
    %193 = tpu.matmul %189, %7, %cst_51 {dimension_numbers = #tpu.dot_dimension_numbers<[1], [0], [0], [1], [0, 0, 1, 1], [], []>} : vector<1x128xf32>, vector<128x512xf32>, vector<1x512xf32> -> vector<1x512xf32>
    %194 = arith.addf %192, %193 : vector<1x512xf32>
    %195 = vector.extract_strided_slice %194 {offsets = [0, 0], sizes = [1, 128], strides = [1, 1]} : vector<1x512xf32> to vector<1x128xf32>
    %196 = arith.negf %195 : vector<1x128xf32>
    %197 = math.exp %196 : vector<1x128xf32>
    %cst_52 = arith.constant 1.000000e+00 : f32
    %198 = vector.broadcast %cst_52 : f32 to vector<1x128xf32>
    %199 = arith.addf %198, %197 : vector<1x128xf32>
    %200 = arith.divf %198, %199 : vector<1x128xf32>
    %201 = vector.extract_strided_slice %194 {offsets = [0, 128], sizes = [1, 128], strides = [1, 1]} : vector<1x512xf32> to vector<1x128xf32>
    %202 = arith.negf %201 : vector<1x128xf32>
    %203 = math.exp %202 : vector<1x128xf32>
    %cst_53 = arith.constant 1.000000e+00 : f32
    %204 = vector.broadcast %cst_53 : f32 to vector<1x128xf32>
    %205 = arith.addf %204, %203 : vector<1x128xf32>
    %206 = arith.divf %204, %205 : vector<1x128xf32>
    %207 = vector.extract_strided_slice %194 {offsets = [0, 256], sizes = [1, 128], strides = [1, 1]} : vector<1x512xf32> to vector<1x128xf32>
    %208 = math.tanh %207 : vector<1x128xf32>
    %209 = vector.extract_strided_slice %194 {offsets = [0, 384], sizes = [1, 128], strides = [1, 1]} : vector<1x512xf32> to vector<1x128xf32>
    %210 = arith.negf %209 : vector<1x128xf32>
    %211 = math.exp %210 : vector<1x128xf32>
    %cst_54 = arith.constant 1.000000e+00 : f32
    %212 = vector.broadcast %cst_54 : f32 to vector<1x128xf32>
    %213 = arith.addf %212, %211 : vector<1x128xf32>
    %214 = arith.divf %212, %213 : vector<1x128xf32>
    %215 = arith.mulf %187, %200 : vector<1x128xf32>
    %216 = arith.mulf %208, %206 : vector<1x128xf32>
    %217 = arith.addf %215, %216 : vector<1x128xf32>
    %218 = math.tanh %217 : vector<1x128xf32>
    %219 = arith.mulf %218, %214 : vector<1x128xf32>
    %c7_i32 = arith.constant 7 : i32
    %c1_i32_55 = arith.constant 1 : i32
    %220 = arith.muli %c7_i32, %c1_i32_55 : i32
    %221 = arith.index_cast %220 : i32 to index
    %c0_56 = arith.constant 0 : index
    %222 = vector.load %arg11[%221, %c0_56] : memref<8x512xf32, #tpu.memory_space<vmem>>, vector<1x512xf32>
    %cst_57 = arith.constant dense<0.000000e+00> : vector<1x512xf32>
    %223 = tpu.matmul %219, %7, %cst_57 {dimension_numbers = #tpu.dot_dimension_numbers<[1], [0], [0], [1], [0, 0, 1, 1], [], []>} : vector<1x128xf32>, vector<128x512xf32>, vector<1x512xf32> -> vector<1x512xf32>
    %224 = arith.addf %222, %223 : vector<1x512xf32>
    %225 = vector.extract_strided_slice %224 {offsets = [0, 0], sizes = [1, 128], strides = [1, 1]} : vector<1x512xf32> to vector<1x128xf32>
    %226 = arith.negf %225 : vector<1x128xf32>
    %227 = math.exp %226 : vector<1x128xf32>
    %cst_58 = arith.constant 1.000000e+00 : f32
    %228 = vector.broadcast %cst_58 : f32 to vector<1x128xf32>
    %229 = arith.addf %228, %227 : vector<1x128xf32>
    %230 = arith.divf %228, %229 : vector<1x128xf32>
    %231 = vector.extract_strided_slice %224 {offsets = [0, 128], sizes = [1, 128], strides = [1, 1]} : vector<1x512xf32> to vector<1x128xf32>
    %232 = arith.negf %231 : vector<1x128xf32>
    %233 = math.exp %232 : vector<1x128xf32>
    %cst_59 = arith.constant 1.000000e+00 : f32
    %234 = vector.broadcast %cst_59 : f32 to vector<1x128xf32>
    %235 = arith.addf %234, %233 : vector<1x128xf32>
    %236 = arith.divf %234, %235 : vector<1x128xf32>
    %237 = vector.extract_strided_slice %224 {offsets = [0, 256], sizes = [1, 128], strides = [1, 1]} : vector<1x512xf32> to vector<1x128xf32>
    %238 = math.tanh %237 : vector<1x128xf32>
    %239 = vector.extract_strided_slice %224 {offsets = [0, 384], sizes = [1, 128], strides = [1, 1]} : vector<1x512xf32> to vector<1x128xf32>
    %240 = arith.negf %239 : vector<1x128xf32>
    %241 = math.exp %240 : vector<1x128xf32>
    %cst_60 = arith.constant 1.000000e+00 : f32
    %242 = vector.broadcast %cst_60 : f32 to vector<1x128xf32>
    %243 = arith.addf %242, %241 : vector<1x128xf32>
    %244 = arith.divf %242, %243 : vector<1x128xf32>
    %245 = arith.mulf %217, %230 : vector<1x128xf32>
    %246 = arith.mulf %238, %236 : vector<1x128xf32>
    %247 = arith.addf %245, %246 : vector<1x128xf32>
    %248 = math.tanh %247 : vector<1x128xf32>
    %249 = arith.mulf %248, %244 : vector<1x128xf32>
    %c8_i32 = arith.constant 8 : i32
    %c0_61 = arith.constant 0 : index
    %c0_62 = arith.constant 0 : index
    %250 = vector.load %arg8[%c0_61, %c0_62] : memref<1x128xf32, #tpu.memory_space<vmem>>, vector<1x128xf32>
    tpu.vector_store %arg8[%c0_61, %c0_62], %249 {strides = array<i32>} : memref<1x128xf32, #tpu.memory_space<vmem>>, vector<1x128xf32>,
    %c0_63 = arith.constant 0 : index
    %c0_64 = arith.constant 0 : index
    %251 = vector.load %arg9[%c0_63, %c0_64] : memref<1x128xf32, #tpu.memory_space<vmem>>, vector<1x128xf32>
    tpu.vector_store %arg9[%c0_63, %c0_64], %247 {strides = array<i32>} : memref<1x128xf32, #tpu.memory_space<vmem>>, vector<1x128xf32>,
    %c0_65 = arith.constant 0 : index
    %c0_66 = arith.constant 0 : index
    %252 = vector.load %arg6[%c0_65, %c0_66] : memref<128x65xf32, #tpu.memory_space<vmem>>, vector<128x65xf32>
    %cst_67 = arith.constant dense<0.000000e+00> : vector<1x65xf32>
    %253 = tpu.matmul %249, %252, %cst_67 {dimension_numbers = #tpu.dot_dimension_numbers<[1], [0], [0], [1], [0, 0, 1, 1], [], []>} : vector<1x128xf32>, vector<128x65xf32>, vector<1x65xf32> -> vector<1x65xf32>
    %c0_68 = arith.constant 0 : index
    %c0_69 = arith.constant 0 : index
    %254 = vector.load %arg7[%c0_68, %c0_69] : memref<1x65xf32, #tpu.memory_space<vmem>>, vector<1x65xf32>
    %255 = arith.addf %253, %254 : vector<1x65xf32>
    %cst_70 = arith.constant dense<0xFF800000> : vector<1xf32>
    %256 = vector.multi_reduction <maximumf>, %255, %cst_70 [1] : vector<1x65xf32> to vector<1xf32>
    %257 = vector.shape_cast %256 : vector<1xf32> to vector<1x1xf32>
    %258 = vector.broadcast %257 : vector<1x1xf32> to vector<1x65xf32>
    %259 = arith.subf %255, %258 : vector<1x65xf32>
    %260 = math.exp %259 : vector<1x65xf32>
    %cst_71 = arith.constant dense<0.000000e+00> : vector<1xf32>
    %261 = vector.multi_reduction <add>, %260, %cst_71 [1] : vector<1x65xf32> to vector<1xf32>
    %262 = vector.shape_cast %261 : vector<1xf32> to vector<1x1xf32>
    %263 = vector.broadcast %262 : vector<1x1xf32> to vector<1x65xf32>
    %264 = arith.divf %260, %263 : vector<1x65xf32>
    %c0_72 = arith.constant 0 : index
    %c0_73 = arith.constant 0 : index
    %265 = vector.load %arg10[%c0_72, %c0_73] : memref<1x65xf32, #tpu.memory_space<vmem>>, vector<1x65xf32>
    tpu.vector_store %arg10[%c0_72, %c0_73], %264 {strides = array<i32>} : memref<1x65xf32, #tpu.memory_space<vmem>>, vector<1x65xf32>,
    return
  }
}

</mosaic_0001>

<llo_original>
// kernel: tpu_custom_call.1
$region0: #{tpu_custom_call.1}
  #allocation0 [shape = 'u32[]', space=smem, size = 0x4, offset = 0x4, fixed_abs, tag = 'smem constant byte address 0x4 - core index']
  #allocation1 [shape = 'u32[144,128]{1,0:T(1,128)}', space=vmem, size = 0x12000, scoped, tag = 'internal scratch']
  #allocation2 [shape = 'f32[8,512]{1,0:T(8,128)}', space=vmem, size = 0x4000, scoped, tag = 'scratch operand']
  %s0 = inlined_call_operand.vmem [shape: f32[8,65], index: 0, kind: input, shape index: {}]
  %s1 = inlined_call_operand.vmem [shape: f32[1,128], index: 1, kind: input, shape index: {}]
  %s2 = inlined_call_operand.vmem [shape: f32[1,128], index: 2, kind: input, shape index: {}]
  %s3 = inlined_call_operand.hbm [shape: f32[65,512], index: 3, kind: input, shape index: {}]
  %s4 = inlined_call_operand.hbm [shape: f32[128,512], index: 4, kind: input, shape index: {}]
  %s5 = inlined_call_operand.vmem [shape: f32[1,512], index: 5, kind: input, shape index: {}]
  %s6 = inlined_call_operand.vmem [shape: f32[128,65], index: 6, kind: input, shape index: {}]
  %s7 = inlined_call_operand.vmem [shape: f32[1,65], index: 7, kind: input, shape index: {}]
  %s8 = inlined_call_operand.hbm [shape: f32[1,128], index: 8, kind: output, shape index: {0}]
  %s9 = inlined_call_operand.hbm [shape: f32[1,128], index: 9, kind: output, shape index: {1}]
  %s10 = inlined_call_operand.hbm [shape: f32[1,65], index: 10, kind: output, shape index: {2}]
  %11 = xla_tuple %s8, %s9, %s10
  %s12 = sld [smem:[#allocation0]]
  $region66: #{tpu_custom_call.1} parent=0
    _
  %s14 = ssub.s32 1, %s12
  %s15 = scalar_select 0, %s14, %s12
  $region1: #{tpu_custom_call.1} parent=0
    #allocation3 [shape = 'u8[147456]{0}', space=vmem, size = 0x24000, scoped, tag = 'input window, operand 3, single buffered']
    #allocation4 [shape = 's32[1]{0}', space=sflag, size = 0x4, scoped, tag = 'scoped memory for tpu_custom_call.1']
    #allocation5 [shape = 's32[1]{0}', space=sflag, size = 0x4, scoped, tag = 'scoped memory for tpu_custom_call.1']
    #allocation6 [shape = 'u8[262144]{0}', space=vmem, size = 0x40000, scoped, tag = 'input window, operand 4, single buffered']
    #allocation7 [shape = 's32[1]{0}', space=sflag, size = 0x4, scoped, tag = 'scoped memory for tpu_custom_call.1']
    #allocation8 [shape = 'u8[512]{0}', space=vmem, size = 0x400, scoped, tag = 'output window, operand 0, single buffered']
    #allocation9 [shape = 'u8[512]{0}', space=vmem, size = 0x400, scoped, tag = 'output window, operand 1, single buffered']
    #allocation10 [shape = 's32[1]{0}', space=sflag, size = 0x4, scoped, tag = 'scoped memory for tpu_custom_call.1']
    #allocation11 [shape = 'u8[512]{0}', space=vmem, size = 0x400, scoped, tag = 'output window, operand 2, single buffered']
    %16 = vsyncpa [#allocation4], 0
    %17 = vsyncpa [#allocation7], 0
    %18 = vsyncpa [#allocation5], 0
    %19 = vsyncpa [#allocation10], 0
    // Predicated region
    $region2: #{tpu_custom_call.1} parent=1 // pred_check
      _
    $region3: #{tpu_custom_call.1} parent=1 // pred_check_branch
      %21 = sbr.rel (0) target = $region5
    $region4: #{tpu_custom_call.1} parent=1 // pred_region
      _
    $region5: #{tpu_custom_call.1} parent=1 // pred_fallthru
      _
    // Predicated region
    $region6: #{tpu_custom_call.1} parent=1 // pred_check
      _
    $region7: #{tpu_custom_call.1} parent=1 // pred_check_branch
      %23 = sbr.rel (0) target = $region9
    $region8: #{tpu_custom_call.1} parent=1 // pred_region
      _
    $region9: #{tpu_custom_call.1} parent=1 // pred_fallthru
      _
    // Predicated region
    $region10: #{tpu_custom_call.1} parent=1 // pred_check
      _
    $region11: #{tpu_custom_call.1} parent=1 // pred_check_branch
      %25 = sbr.rel (0) target = $region13
    $region12: #{tpu_custom_call.1} parent=1 // pred_region
      _
    $region13: #{tpu_custom_call.1} parent=1 // pred_fallthru
      _
    // Predicated region
    $region14: #{tpu_custom_call.1} parent=1 // pred_check
      _
    $region15: #{tpu_custom_call.1} parent=1 // pred_check_branch
      %27 = sbr.rel (0) target = $region17
    $region16: #{tpu_custom_call.1} parent=1 // pred_region
      %s29 = ssub.s32 4608, 4608
      %30 = vsyncadd [#allocation4], %s29
      %s31 = sshll.u32 [#allocation3], 4
      %s32 = int_to_ptr.vmem [resolvable:$true] %s31
      %37 = dma.hbm_to_vmem [thread:$0]  %s3, 4608, %s32, [#allocation4], 512, 512, 32
    $region17: #{tpu_custom_call.1} parent=1 // pred_fallthru
      _
    // Predicated region
    $region18: #{tpu_custom_call.1} parent=1 // pred_check
      _
    $region19: #{tpu_custom_call.1} parent=1 // pred_check_branch
      %39 = sbr.rel (0) target = $region21
    $region20: #{tpu_custom_call.1} parent=1 // pred_region
      %s41 = ssub.s32 8192, 8192
      %42 = vsyncadd [#allocation7], %s41
      %s43 = sshll.u32 [#allocation6], 4
      %s44 = int_to_ptr.vmem [resolvable:$true] %s43
      %49 = dma.hbm_to_vmem [thread:$0]  %s4, 8192, %s44, [#allocation7], 512, 512, 32
    $region21: #{tpu_custom_call.1} parent=1 // pred_fallthru
      _
    // Predicated region
    $region22: #{tpu_custom_call.1} parent=1 // pred_check
      _
    $region23: #{tpu_custom_call.1} parent=1 // pred_check_branch
      %51 = sbr.rel (0) target = $region25
    $region24: #{tpu_custom_call.1} parent=1 // pred_region
      _
    $region25: #{tpu_custom_call.1} parent=1 // pred_fallthru
      _
    // Predicated region
    $region26: #{tpu_custom_call.1} parent=1 // pred_check
      _
    $region27: #{tpu_custom_call.1} parent=1 // pred_check_branch
      %53 = sbr.rel (0) target = $region29
    $region28: #{tpu_custom_call.1} parent=1 // pred_region
      _
    $region29: #{tpu_custom_call.1} parent=1 // pred_fallthru
      _
    // Predicated region
    $region30: #{tpu_custom_call.1} parent=1 // pred_check
      _
    $region31: #{tpu_custom_call.1} parent=1 // pred_check_branch
      %55 = sbr.rel (0) target = $region33
    $region32: #{tpu_custom_call.1} parent=1 // pred_region
      _
    $region33: #{tpu_custom_call.1} parent=1 // pred_fallthru
      _
    // Predicated region
    $region34: #{tpu_custom_call.1} parent=1 // pred_check
      _
    $region35: #{tpu_custom_call.1} parent=1 // pred_check_branch
      %57 = sbr.rel (0) target = $region37
    $region36: #{tpu_custom_call.1} parent=1 // pred_region
      %58 = dma.done [#allocation4], 4608
    $region37: #{tpu_custom_call.1} parent=1 // pred_fallthru
      _
    // Predicated region
    $region38: #{tpu_custom_call.1} parent=1 // pred_check
      _
    $region39: #{tpu_custom_call.1} parent=1 // pred_check_branch
      %60 = sbr.rel (0) target = $region41
    $region40: #{tpu_custom_call.1} parent=1 // pred_region
      %61 = dma.done [#allocation7], 8192
    $region41: #{tpu_custom_call.1} parent=1 // pred_fallthru
      _
    %v62 = vld [vmem:[%s0] sm:$0xff]
    %v63 = vld [vmem:[#allocation3] sm:$0xff]
    %v64 = vld [vmem:[#allocation3 + $0x8] sm:$0xff]
    %v65 = vld [vmem:[#allocation3 + $0x10] sm:$0xff]
    %v66 = vld [vmem:[#allocation3 + $0x18] sm:$0xff]
    %v67 = vld [vmem:[#allocation3 + $0x20] sm:$0xff]
    %v68 = vld [vmem:[#allocation3 + $0x28] sm:$0xff]
    %v69 = vld [vmem:[#allocation3 + $0x30] sm:$0xff]
    %v70 = vld [vmem:[#allocation3 + $0x38] sm:$0xff]
    %v71 = vld [vmem:[#allocation3 + $0x40] sm:$0xff]
    %v72 = vld [vmem:[#allocation3 + $0x48] sm:$0xff]
    %v73 = vld [vmem:[#allocation3 + $0x50] sm:$0xff]
    %v74 = vld [vmem:[#allocation3 + $0x58] sm:$0xff]
    %v75 = vld [vmem:[#allocation3 + $0x60] sm:$0xff]
    %v76 = vld [vmem:[#allocation3 + $0x68] sm:$0xff]
    %v77 = vld [vmem:[#allocation3 + $0x70] sm:$0xff]
    %v78 = vld [vmem:[#allocation3 + $0x78] sm:$0xff]
    %v79 = vld [vmem:[#allocation3 + $0x80] sm:$0xff]
    %v80 = vld [vmem:[#allocation3 + $0x88] sm:$0xff]
    %v81 = vld [vmem:[#allocation3 + $0x90] sm:$0xff]
    %v82 = vld [vmem:[#allocation3 + $0x98] sm:$0xff]
    %v83 = vld [vmem:[#allocation3 + $0xa0] sm:$0xff]
    %v84 = vld [vmem:[#allocation3 + $0xa8] sm:$0xff]
    %v85 = vld [vmem:[#allocation3 + $0xb0] sm:$0xff]
    %v86 = vld [vmem:[#allocation3 + $0xb8] sm:$0xff]
    %v87 = vld [vmem:[#allocation3 + $0xc0] sm:$0xff]
    %v88 = vld [vmem:[#allocation3 + $0xc8] sm:$0xff]
    %v89 = vld [vmem:[#allocation3 + $0xd0] sm:$0xff]
    %v90 = vld [vmem:[#allocation3 + $0xd8] sm:$0xff]
    %v91 = vld [vmem:[#allocation3 + $0xe0] sm:$0xff]
    %v92 = vld [vmem:[#allocation3 + $0xe8] sm:$0xff]
    %v93 = vld [vmem:[#allocation3 + $0xf0] sm:$0xff]
    %v94 = vld [vmem:[#allocation3 + $0xf8] sm:$0xff]
    %v95 = vld [vmem:[#allocation3 + $0x100] sm:$0x1]
    %v96 = vld [vmem:[#allocation3 + $0x108] sm:$0x1]
    %v97 = vld [vmem:[#allocation3 + $0x110] sm:$0x1]
    %v98 = vld [vmem:[#allocation3 + $0x118] sm:$0x1]
    %v99 = vld [vmem:[%s5] sm:$0xf]
    %v101 = vlaneseq
    %v102 = vshrl.u32 %v101, 7
    %v103 = vsub.s32 0, %v102
    %v104 = vrot.slane %v99, %v103
    %v105 = vlaneseq
    %v106 = vshrl.u32 %v105, 7
    %v107 = vsub.s32 1, %v106
    %v108 = vrot.slane %v99, %v107
    %v109 = vlaneseq
    %v110 = vshrl.u32 %v109, 7
    %v111 = vsub.s32 2, %v110
    %v112 = vrot.slane %v99, %v111
    %v113 = vlaneseq
    %v114 = vshrl.u32 %v113, 7
    %v115 = vsub.s32 3, %v114
    %v116 = vrot.slane %v99, %v115
    %vm121 = vcmask 531456
    %v123 = vsel %vm121, %v62, 0
    %vm125 = vcmask 1040384
    %v127 = vsel %vm125, %v95, 0
    %v130 = vsel %vm125, %v96, 0
    %v133 = vsel %vm125, %v97, 0
    %v136 = vsel %vm125, %v98, 0
    %138 = vmatprep.subr.mxu0 0.0
    %139 = vmatpush1.msra.mxu0 0.0
    %140 = vmatprep.subr.mxu0 0.0
    %141 = vmatpush1.msra.mxu0 0.0
    %142 = vmatprep.subr.mxu0 0.0
    %143 = vmatpush1.msra.mxu0 0.0
    %144 = vmatprep.subr.mxu0 0.0
    %145 = vmatpush1.msra.mxu0 0.0
    %146 = vmatprep.subr.mxu0 0.0
    %147 = vmatpush1.msra.mxu0 0.0
    %148 = vmatprep.subr.mxu0 0.0
    %149 = vmatpush1.msra.mxu0 0.0
    %150 = vmatprep.subr.mxu0 0.0
    %151 = vmatpush1.msra.mxu0 0.0
    %152 = vmatprep.subr.mxu0 %v130
    %153 = vmatpush1.msra.mxu0 %v127
    %154 = vmatprep.subr.mxu0 %v92
    %155 = vmatpush1.msra.mxu0 %v91
    %156 = vmatprep.subr.mxu0 %v88
    %157 = vmatpush1.msra.mxu0 %v87
    %158 = vmatprep.subr.mxu0 %v84
    %159 = vmatpush1.msra.mxu0 %v83
    %160 = vmatprep.subr.mxu0 %v80
    %161 = vmatpush1.msra.mxu0 %v79
    %162 = vmatprep.subr.mxu0 %v76
    %163 = vmatpush1.msra.mxu0 %v75
    %164 = vmatprep.subr.mxu0 %v72
    %165 = vmatpush1.msra.mxu0 %v71
    %166 = vmatprep.subr.mxu0 %v68
    %167 = vmatpush1.msra.mxu0 %v67
    %168 = vmatprep.subr.mxu0 %v64
    %169 = vmatpush1.msra.mxu0 %v63
    %170 = vmatprep.subr.mxu0 0.0
    %171 = vmatpush2.msra.mxu0 0.0
    %172 = vmatprep.subr.mxu0 0.0
    %173 = vmatpush2.msra.mxu0 0.0
    %174 = vmatprep.subr.mxu0 0.0
    %175 = vmatpush2.msra.mxu0 0.0
    %176 = vmatprep.subr.mxu0 0.0
    %177 = vmatpush2.msra.mxu0 0.0
    %178 = vmatprep.subr.mxu0 0.0
    %179 = vmatpush2.msra.mxu0 0.0
    %180 = vmatprep.subr.mxu0 0.0
    %181 = vmatpush2.msra.mxu0 0.0
    %182 = vmatprep.subr.mxu0 0.0
    %183 = vmatpush2.msra.mxu0 0.0
    %184 = vmatprep.subr.mxu0 0.0
    %185 = vmatpush2.msra.mxu0 0.0
    %186 = vmatprep.subr.mxu0 0.0
    %187 = vmatpush2.msra.mxu0 0.0
    %188 = vmatprep.subr.mxu0 0.0
    %189 = vmatpush2.msra.mxu0 0.0
    %190 = vmatprep.subr.mxu0 0.0
    %191 = vmatpush2.msra.mxu0 0.0
    %192 = vmatprep.subr.mxu0 0.0
    %193 = vmatpush2.msra.mxu0 0.0
    %194 = vmatprep.subr.mxu0 0.0
    %195 = vmatpush2.msra.mxu0 0.0
    %196 = vmatprep.subr.mxu0 0.0
    %197 = vmatpush2.msra.mxu0 0.0
    %198 = vmatprep.subr.mxu0 0.0
    %199 = vmatpush2.msra.mxu0 0.0
    %200 = vmatprep.subr.mxu0 0.0
    %201 = vmatpush2.msra.mxu0 0.0
    %202 = vmatprep.mubr.f32.mxu0 0.0
    %203 = vmatmul.mubr.f32.gmra.mxu0 %v123
    %v204 = vpop.f32.mrf.mxu0
    %v205 = vadd.f32 %v104, %v204
    %v206 = vpop.f32.mrf.mxu0
    %v207 = vadd.f32 %v108, %v206
    %208 = vdwg.mxu0
    %209 = vmatprep.subr.mxu0 0.0
    %210 = vmatpush1.msra.mxu0 0.0
    %211 = vmatprep.subr.mxu0 0.0
    %212 = vmatpush1.msra.mxu0 0.0
    %213 = vmatprep.subr.mxu0 0.0
    %214 = vmatpush1.msra.mxu0 0.0
    %215 = vmatprep.subr.mxu0 0.0
    %216 = vmatpush1.msra.mxu0 0.0
    %217 = vmatprep.subr.mxu0 0.0
    %218 = vmatpush1.msra.mxu0 0.0
    %219 = vmatprep.subr.mxu0 0.0
    %220 = vmatpush1.msra.mxu0 0.0
    %221 = vmatprep.subr.mxu0 0.0
    %222 = vmatpush1.msra.mxu0 0.0
    %223 = vmatprep.subr.mxu0 %v136
    %224 = vmatpush1.msra.mxu0 %v133
    %225 = vmatprep.subr.mxu0 %v94
    %226 = vmatpush1.msra.mxu0 %v93
    %227 = vmatprep.subr.mxu0 %v90
    %228 = vmatpush1.msra.mxu0 %v89
    %229 = vmatprep.subr.mxu0 %v86
    %230 = vmatpush1.msra.mxu0 %v85
    %231 = vmatprep.subr.mxu0 %v82
    %232 = vmatpush1.msra.mxu0 %v81
    %233 = vmatprep.subr.mxu0 %v78
    %234 = vmatpush1.msra.mxu0 %v77
    %235 = vmatprep.subr.mxu0 %v74
    %236 = vmatpush1.msra.mxu0 %v73
    %237 = vmatprep.subr.mxu0 %v70
    %238 = vmatpush1.msra.mxu0 %v69
    %239 = vmatprep.subr.mxu0 %v66
    %240 = vmatpush1.msra.mxu0 %v65
    %241 = vmatprep.subr.mxu0 0.0
    %242 = vmatpush2.msra.mxu0 0.0
    %243 = vmatprep.subr.mxu0 0.0
    %244 = vmatpush2.msra.mxu0 0.0
    %245 = vmatprep.subr.mxu0 0.0
    %246 = vmatpush2.msra.mxu0 0.0
    %247 = vmatprep.subr.mxu0 0.0
    %248 = vmatpush2.msra.mxu0 0.0
    %249 = vmatprep.subr.mxu0 0.0
    %250 = vmatpush2.msra.mxu0 0.0
    %251 = vmatprep.subr.mxu0 0.0
    %252 = vmatpush2.msra.mxu0 0.0
    %253 = vmatprep.subr.mxu0 0.0
    %254 = vmatpush2.msra.mxu0 0.0
    %255 = vmatprep.subr.mxu0 0.0
    %256 = vmatpush2.msra.mxu0 0.0
    %257 = vmatprep.subr.mxu0 0.0
    %258 = vmatpush2.msra.mxu0 0.0
    %259 = vmatprep.subr.mxu0 0.0
    %260 = vmatpush2.msra.mxu0 0.0
    %261 = vmatprep.subr.mxu0 0.0
    %262 = vmatpush2.msra.mxu0 0.0
    %263 = vmatprep.subr.mxu0 0.0
    %264 = vmatpush2.msra.mxu0 0.0
    %265 = vmatprep.subr.mxu0 0.0
    %266 = vmatpush2.msra.mxu0 0.0
    %267 = vmatprep.subr.mxu0 0.0
    %268 = vmatpush2.msra.mxu0 0.0
    %269 = vmatprep.subr.mxu0 0.0
    %270 = vmatpush2.msra.mxu0 0.0
    %271 = vmatprep.subr.mxu0 0.0
    %272 = vmatpush2.msra.mxu0 0.0
    %273 = vmatprep.mubr.f32.mxu0 0.0
    %274 = vmatmul.mubr.f32.gmra.mxu0 %v123
    %v275 = vpop.f32.mrf.mxu0
    %v276 = vadd.f32 %v112, %v275
    %v277 = vpop.f32.mrf.mxu0
    %v278 = vadd.f32 %v116, %v277
    %279 = vdwg.mxu0
    %280 = vst [vmem:[#allocation2] sm:$0xff] %v205
    %281 = vst [vmem:[#allocation2 + $0x8] sm:$0xff] %v207
    %282 = vst [vmem:[#allocation2 + $0x10] sm:$0xff] %v276
    %283 = vst [vmem:[#allocation2 + $0x18] sm:$0xff] %v278
    %v284 = vld [vmem:[#allocation6] sm:$0xff]
    %v285 = vld [vmem:[#allocation6 + $0x8] sm:$0xff]
    %v286 = vld [vmem:[#allocation6 + $0x10] sm:$0xff]
    %v287 = vld [vmem:[#allocation6 + $0x18] sm:$0xff]
    %v288 = vld [vmem:[#allocation6 + $0x20] sm:$0xff]
    %v289 = vld [vmem:[#allocation6 + $0x28] sm:$0xff]
    %v290 = vld [vmem:[#allocation6 + $0x30] sm:$0xff]
    %v291 = vld [vmem:[#allocation6 + $0x38] sm:$0xff]
    %v292 = vld [vmem:[#allocation6 + $0x40] sm:$0xff]
    %v293 = vld [vmem:[#allocation6 + $0x48] sm:$0xff]
    %v294 = vld [vmem:[#allocation6 + $0x50] sm:$0xff]
    %v295 = vld [vmem:[#allocation6 + $0x58] sm:$0xff]
    %v296 = vld [vmem:[#allocation6 + $0x60] sm:$0xff]
    %v297 = vld [vmem:[#allocation6 + $0x68] sm:$0xff]
    %v298 = vld [vmem:[#allocation6 + $0x70] sm:$0xff]
    %v299 = vld [vmem:[#allocation6 + $0x78] sm:$0xff]
    %v300 = vld [vmem:[#allocation6 + $0x80] sm:$0xff]
    %v301 = vld [vmem:[#allocation6 + $0x88] sm:$0xff]
    %v302 = vld [vmem:[#allocation6 + $0x90] sm:$0xff]
    %v303 = vld [vmem:[#allocation6 + $0x98] sm:$0xff]
    %v304 = vld [vmem:[#allocation6 + $0xa0] sm:$0xff]
    %v305 = vld [vmem:[#allocation6 + $0xa8] sm:$0xff]
    %v306 = vld [vmem:[#allocation6 + $0xb0] sm:$0xff]
    %v307 = vld [vmem:[#allocation6 + $0xb8] sm:$0xff]
    %v308 = vld [vmem:[#allocation6 + $0xc0] sm:$0xff]
    %v309 = vld [vmem:[#allocation6 + $0xc8] sm:$0xff]
    %v310 = vld [vmem:[#allocation6 + $0xd0] sm:$0xff]
    %v311 = vld [vmem:[#allocation6 + $0xd8] sm:$0xff]
    %v312 = vld [vmem:[#allocation6 + $0xe0] sm:$0xff]
    %v313 = vld [vmem:[#allocation6 + $0xe8] sm:$0xff]
    %v314 = vld [vmem:[#allocation6 + $0xf0] sm:$0xff]
    %v315 = vld [vmem:[#allocation6 + $0xf8] sm:$0xff]
    %v316 = vld [vmem:[#allocation6 + $0x100] sm:$0xff]
    %v317 = vld [vmem:[#allocation6 + $0x108] sm:$0xff]
    %v318 = vld [vmem:[#allocation6 + $0x110] sm:$0xff]
    %v319 = vld [vmem:[#allocation6 + $0x118] sm:$0xff]
    %v320 = vld [vmem:[#allocation6 + $0x120] sm:$0xff]
    %v321 = vld [vmem:[#allocation6 + $0x128] sm:$0xff]
    %v322 = vld [vmem:[#allocation6 + $0x130] sm:$0xff]
    %v323 = vld [vmem:[#allocation6 + $0x138] sm:$0xff]
    %v324 = vld [vmem:[#allocation6 + $0x140] sm:$0xff]
    %v325 = vld [vmem:[#allocation6 + $0x148] sm:$0xff]
    %v326 = vld [vmem:[#allocation6 + $0x150] sm:$0xff]
    %v327 = vld [vmem:[#allocation6 + $0x158] sm:$0xff]
    %v328 = vld [vmem:[#allocation6 + $0x160] sm:$0xff]
    %v329 = vld [vmem:[#allocation6 + $0x168] sm:$0xff]
    %v330 = vld [vmem:[#allocation6 + $0x170] sm:$0xff]
    %v331 = vld [vmem:[#allocation6 + $0x178] sm:$0xff]
    %v332 = vld [vmem:[#allocation6 + $0x180] sm:$0xff]
    %v333 = vld [vmem:[#allocation6 + $0x188] sm:$0xff]
    %v334 = vld [vmem:[#allocation6 + $0x190] sm:$0xff]
    %v335 = vld [vmem:[#allocation6 + $0x198] sm:$0xff]
    %v336 = vld [vmem:[#allocation6 + $0x1a0] sm:$0xff]
    %v337 = vld [vmem:[#allocation6 + $0x1a8] sm:$0xff]
    %v338 = vld [vmem:[#allocation6 + $0x1b0] sm:$0xff]
    %v339 = vld [vmem:[#allocation6 + $0x1b8] sm:$0xff]
    %v340 = vld [vmem:[#allocation6 + $0x1c0] sm:$0xff]
    %v341 = vld [vmem:[#allocation6 + $0x1c8] sm:$0xff]
    %v342 = vld [vmem:[#allocation6 + $0x1d0] sm:$0xff]
    %v343 = vld [vmem:[#allocation6 + $0x1d8] sm:$0xff]
    %v344 = vld [vmem:[#allocation6 + $0x1e0] sm:$0xff]
    %v345 = vld [vmem:[#allocation6 + $0x1e8] sm:$0xff]
    %v346 = vld [vmem:[#allocation6 + $0x1f0] sm:$0xff]
    %v347 = vld [vmem:[#allocation6 + $0x1f8] sm:$0xff]
    %v348 = vld [vmem:[%s1] sm:$0x1]
    %v349 = vld [vmem:[%s2] sm:$0x1]
    %v350 = vld [vmem:[#allocation2] ss:$8 sm:$0xf]
    %351 = vmatprep.subr.mxu0 %v345
    %352 = vmatpush1.msra.mxu0 %v344
    %353 = vmatprep.subr.mxu0 %v341
    %354 = vmatpush1.msra.mxu0 %v340
    %355 = vmatprep.subr.mxu0 %v337
    %356 = vmatpush1.msra.mxu0 %v336
    %357 = vmatprep.subr.mxu0 %v333
    %358 = vmatpush1.msra.mxu0 %v332
    %359 = vmatprep.subr.mxu0 %v329
    %360 = vmatpush1.msra.mxu0 %v328
    %361 = vmatprep.subr.mxu0 %v325
    %362 = vmatpush1.msra.mxu0 %v324
    %363 = vmatprep.subr.mxu0 %v321
    %364 = vmatpush1.msra.mxu0 %v320
    %365 = vmatprep.subr.mxu0 %v317
    %366 = vmatpush1.msra.mxu0 %v316
    %367 = vmatprep.subr.mxu0 %v313
    %368 = vmatpush1.msra.mxu0 %v312
    %369 = vmatprep.subr.mxu0 %v309
    %370 = vmatpush1.msra.mxu0 %v308
    %371 = vmatprep.subr.mxu0 %v305
    %372 = vmatpush1.msra.mxu0 %v304
    %373 = vmatprep.subr.mxu0 %v301
    %374 = vmatpush1.msra.mxu0 %v300
    %375 = vmatprep.subr.mxu0 %v297
    %376 = vmatpush1.msra.mxu0 %v296
    %377 = vmatprep.subr.mxu0 %v293
    %378 = vmatpush1.msra.mxu0 %v292
    %379 = vmatprep.subr.mxu0 %v289
    %380 = vmatpush1.msra.mxu0 %v288
    %381 = vmatprep.subr.mxu0 %v285
    %382 = vmatpush1.msra.mxu0 %v284
    %383 = vmatprep.subr.mxu0 0.0
    %384 = vmatpush2.msra.mxu0 0.0
    %385 = vmatprep.subr.mxu0 0.0
    %386 = vmatpush2.msra.mxu0 0.0
    %387 = vmatprep.subr.mxu0 0.0
    %388 = vmatpush2.msra.mxu0 0.0
    %389 = vmatprep.subr.mxu0 0.0
    %390 = vmatpush2.msra.mxu0 0.0
    %391 = vmatprep.subr.mxu0 0.0
    %392 = vmatpush2.msra.mxu0 0.0
    %393 = vmatprep.subr.mxu0 0.0
    %394 = vmatpush2.msra.mxu0 0.0
    %395 = vmatprep.subr.mxu0 0.0
    %396 = vmatpush2.msra.mxu0 0.0
    %397 = vmatprep.subr.mxu0 0.0
    %398 = vmatpush2.msra.mxu0 0.0
    %399 = vmatprep.subr.mxu0 0.0
    %400 = vmatpush2.msra.mxu0 0.0
    %401 = vmatprep.subr.mxu0 0.0
    %402 = vmatpush2.msra.mxu0 0.0
    %403 = vmatprep.subr.mxu0 0.0
    %404 = vmatpush2.msra.mxu0 0.0
    %405 = vmatprep.subr.mxu0 0.0
    %406 = vmatpush2.msra.mxu0 0.0
    %407 = vmatprep.subr.mxu0 0.0
    %408 = vmatpush2.msra.mxu0 0.0
    %409 = vmatprep.subr.mxu0 0.0
    %410 = vmatpush2.msra.mxu0 0.0
    %411 = vmatprep.subr.mxu0 0.0
    %412 = vmatpush2.msra.mxu0 0.0
    %413 = vmatprep.subr.mxu0 0.0
    %414 = vmatpush2.msra.mxu0 0.0
    %415 = vmatprep.mubr.f32.mxu0 0.0
    %416 = vmatmul.mubr.f32.gmra.mxu0 %v348
    %v417 = vpop.f32.mrf.mxu0
    %v418 = vadd.f32 0.0, %v417
    %v419 = vpop.f32.mrf.mxu0
    %v420 = vadd.f32 0.0, %v419
    %421 = vdwg.mxu0
    %422 = vmatprep.subr.mxu0 %v347
    %423 = vmatpush1.msra.mxu0 %v346
    %424 = vmatprep.subr.mxu0 %v343
    %425 = vmatpush1.msra.mxu0 %v342
    %426 = vmatprep.subr.mxu0 %v339
    %427 = vmatpush1.msra.mxu0 %v338
    %428 = vmatprep.subr.mxu0 %v335
    %429 = vmatpush1.msra.mxu0 %v334
    %430 = vmatprep.subr.mxu0 %v331
    %431 = vmatpush1.msra.mxu0 %v330
    %432 = vmatprep.subr.mxu0 %v327
    %433 = vmatpush1.msra.mxu0 %v326
    %434 = vmatprep.subr.mxu0 %v323
    %435 = vmatpush1.msra.mxu0 %v322
    %436 = vmatprep.subr.mxu0 %v319
    %437 = vmatpush1.msra.mxu0 %v318
    %438 = vmatprep.subr.mxu0 %v315
    %439 = vmatpush1.msra.mxu0 %v314
    %440 = vmatprep.subr.mxu0 %v311
    %441 = vmatpush1.msra.mxu0 %v310
    %442 = vmatprep.subr.mxu0 %v307
    %443 = vmatpush1.msra.mxu0 %v306
    %444 = vmatprep.subr.mxu0 %v303
    %445 = vmatpush1.msra.mxu0 %v302
    %446 = vmatprep.subr.mxu0 %v299
    %447 = vmatpush1.msra.mxu0 %v298
    %448 = vmatprep.subr.mxu0 %v295
    %449 = vmatpush1.msra.mxu0 %v294
    %450 = vmatprep.subr.mxu0 %v291
    %451 = vmatpush1.msra.mxu0 %v290
    %452 = vmatprep.subr.mxu0 %v287
    %453 = vmatpush1.msra.mxu0 %v286
    %454 = vmatprep.subr.mxu0 0.0
    %455 = vmatpush2.msra.mxu0 0.0
    %456 = vmatprep.subr.mxu0 0.0
    %457 = vmatpush2.msra.mxu0 0.0
    %458 = vmatprep.subr.mxu0 0.0
    %459 = vmatpush2.msra.mxu0 0.0
    %460 = vmatprep.subr.mxu0 0.0
    %461 = vmatpush2.msra.mxu0 0.0
    %462 = vmatprep.subr.mxu0 0.0
    %463 = vmatpush2.msra.mxu0 0.0
    %464 = vmatprep.subr.mxu0 0.0
    %465 = vmatpush2.msra.mxu0 0.0
    %466 = vmatprep.subr.mxu0 0.0
    %467 = vmatpush2.msra.mxu0 0.0
    %468 = vmatprep.subr.mxu0 0.0
    %469 = vmatpush2.msra.mxu0 0.0
    %470 = vmatprep.subr.mxu0 0.0
    %471 = vmatpush2.msra.mxu0 0.0
    %472 = vmatprep.subr.mxu0 0.0
    %473 = vmatpush2.msra.mxu0 0.0
    %474 = vmatprep.subr.mxu0 0.0
    %475 = vmatpush2.msra.mxu0 0.0
    %476 = vmatprep.subr.mxu0 0.0
    %477 = vmatpush2.msra.mxu0 0.0
    %478 = vmatprep.subr.mxu0 0.0
    %479 = vmatpush2.msra.mxu0 0.0
    %480 = vmatprep.subr.mxu0 0.0
    %481 = vmatpush2.msra.mxu0 0.0
    %482 = vmatprep.subr.mxu0 0.0
    %483 = vmatpush2.msra.mxu0 0.0
    %484 = vmatprep.subr.mxu0 0.0
    %485 = vmatpush2.msra.mxu0 0.0
    %486 = vmatprep.mubr.f32.mxu0 0.0
    %487 = vmatmul.mubr.f32.gmra.mxu0 %v348
    %v488 = vpop.f32.mrf.mxu0
    %v489 = vadd.f32 0.0, %v488
    %v490 = vpop.f32.mrf.mxu0
    %v491 = vadd.f32 0.0, %v490
    %492 = vdwg.mxu0
    %v497 = vcombine.low %v418, %v420
    %v498 = vcombine.low %v489, %v491
    %v500 = vunpack.c.l.s4 1966171168
    %v501 = vunpack.c.0.s8 %v500
    %v502 = vlaneseq
    %v503 = vshrl.u32 %v502, 7
    %v504 = vsub.s32 %v501, %v503
    %v505 = vrot.slane %v497, %v504
    %v507 = vunpack.c.l.s4 1966171168
    %v508 = vunpack.c.0.s8 %v507
    %v509 = vlaneseq
    %v510 = vshrl.u32 %v509, 7
    %v511 = vsub.s32 %v508, %v510
    %v512 = vrot.slane %v498, %v511
    %v513 = vcombine.low %v505, %v512
    %v515 = vunpack.c.l.s4 1966171168
    %v516 = vunpack.c.0.s8 %v515
    %v517 = vlaneseq
    %v518 = vshrl.u32 %v517, 7
    %v519 = vsub.s32 %v516, %v518
    %v520 = vrot.slane %v513, %v519
    %v522 = vadd.f32 %v350, %v520
    %v523 = vxor.u32 %v522, 2147483648
    %v524 = vmul.f32 %v523, 1.442695
    %v525 = vpow.pop %v524
    %v526 = vadd.f32 %v525, 1.0
    %v527 = vrcp.pop %v526
    %v528 = vmul.f32 1.0, %v527
    %v530 = vrot.slane %v522, 1
    %v532 = vxor.u32 %v530, 2147483648
    %v533 = vmul.f32 %v532, 1.442695
    %v534 = vpow.pop %v533
    %v535 = vadd.f32 %v534, 1.0
    %v536 = vrcp.pop %v535
    %v537 = vmul.f32 1.0, %v536
    %v538 = vrot.slane %v522, 2
    %v540 = vtanh.pop %v538
    %v541 = vrot.slane %v522, 3
    %v543 = vxor.u32 %v541, 2147483648
    %v544 = vmul.f32 %v543, 1.442695
    %v545 = vpow.pop %v544
    %v546 = vadd.f32 %v545, 1.0
    %v547 = vrcp.pop %v546
    %v548 = vmul.f32 1.0, %v547
    %v549 = vmul.f32 %v349, %v528
    %v550 = vmul.f32 %v540, %v537
    %v551 = vadd.f32 %v549, %v550
    %v552 = vtanh.pop %v551
    %v553 = vmul.f32 %v552, %v548
    %s554 = scalar_lea.vmem [#allocation2], 1
    %v555 = vld [vmem:[%s554] ss:$8 sm:$0xf]
    %556 = vmatprep.subr.mxu0 %v345
    %557 = vmatpush1.msra.mxu0 %v344
    %558 = vmatprep.subr.mxu0 %v341
    %559 = vmatpush1.msra.mxu0 %v340
    %560 = vmatprep.subr.mxu0 %v337
    %561 = vmatpush1.msra.mxu0 %v336
    %562 = vmatprep.subr.mxu0 %v333
    %563 = vmatpush1.msra.mxu0 %v332
    %564 = vmatprep.subr.mxu0 %v329
    %565 = vmatpush1.msra.mxu0 %v328
    %566 = vmatprep.subr.mxu0 %v325
    %567 = vmatpush1.msra.mxu0 %v324
    %568 = vmatprep.subr.mxu0 %v321
    %569 = vmatpush1.msra.mxu0 %v320
    %570 = vmatprep.subr.mxu0 %v317
    %571 = vmatpush1.msra.mxu0 %v316
    %572 = vmatprep.subr.mxu0 %v313
    %573 = vmatpush1.msra.mxu0 %v312
    %574 = vmatprep.subr.mxu0 %v309
    %575 = vmatpush1.msra.mxu0 %v308
    %576 = vmatprep.subr.mxu0 %v305
    %577 = vmatpush1.msra.mxu0 %v304
    %578 = vmatprep.subr.mxu0 %v301
    %579 = vmatpush1.msra.mxu0 %v300
    %580 = vmatprep.subr.mxu0 %v297
    %581 = vmatpush1.msra.mxu0 %v296
    %582 = vmatprep.subr.mxu0 %v293
    %583 = vmatpush1.msra.mxu0 %v292
    %584 = vmatprep.subr.mxu0 %v289
    %585 = vmatpush1.msra.mxu0 %v288
    %586 = vmatprep.subr.mxu0 %v285
    %587 = vmatpush1.msra.mxu0 %v284
    %588 = vmatprep.subr.mxu0 0.0
    %589 = vmatpush2.msra.mxu0 0.0
    %590 = vmatprep.subr.mxu0 0.0
    %591 = vmatpush2.msra.mxu0 0.0
    %592 = vmatprep.subr.mxu0 0.0
    %593 = vmatpush2.msra.mxu0 0.0
    %594 = vmatprep.subr.mxu0 0.0
    %595 = vmatpush2.msra.mxu0 0.0
    %596 = vmatprep.subr.mxu0 0.0
    %597 = vmatpush2.msra.mxu0 0.0
    %598 = vmatprep.subr.mxu0 0.0
    %599 = vmatpush2.msra.mxu0 0.0
    %600 = vmatprep.subr.mxu0 0.0
    %601 = vmatpush2.msra.mxu0 0.0
    %602 = vmatprep.subr.mxu0 0.0
    %603 = vmatpush2.msra.mxu0 0.0
    %604 = vmatprep.subr.mxu0 0.0
    %605 = vmatpush2.msra.mxu0 0.0
    %606 = vmatprep.subr.mxu0 0.0
    %607 = vmatpush2.msra.mxu0 0.0
    %608 = vmatprep.subr.mxu0 0.0
    %609 = vmatpush2.msra.mxu0 0.0
    %610 = vmatprep.subr.mxu0 0.0
    %611 = vmatpush2.msra.mxu0 0.0
    %612 = vmatprep.subr.mxu0 0.0
    %613 = vmatpush2.msra.mxu0 0.0
    %614 = vmatprep.subr.mxu0 0.0
    %615 = vmatpush2.msra.mxu0 0.0
    %616 = vmatprep.subr.mxu0 0.0
    %617 = vmatpush2.msra.mxu0 0.0
    %618 = vmatprep.subr.mxu0 0.0
    %619 = vmatpush2.msra.mxu0 0.0
    %620 = vmatprep.mubr.f32.mxu0 0.0
    %621 = vmatmul.mubr.f32.gmra.mxu0 %v553
    %v622 = vpop.f32.mrf.mxu0
    %v623 = vadd.f32 0.0, %v622
    %v624 = vpop.f32.mrf.mxu0
    %v625 = vadd.f32 0.0, %v624
    %626 = vdwg.mxu0
    %627 = vmatprep.subr.mxu0 %v347
    %628 = vmatpush1.msra.mxu0 %v346
    %629 = vmatprep.subr.mxu0 %v343
    %630 = vmatpush1.msra.mxu0 %v342
    %631 = vmatprep.subr.mxu0 %v339
    %632 = vmatpush1.msra.mxu0 %v338
    %633 = vmatprep.subr.mxu0 %v335
    %634 = vmatpush1.msra.mxu0 %v334
    %635 = vmatprep.subr.mxu0 %v331
    %636 = vmatpush1.msra.mxu0 %v330
    %637 = vmatprep.subr.mxu0 %v327
    %638 = vmatpush1.msra.mxu0 %v326
    %639 = vmatprep.subr.mxu0 %v323
    %640 = vmatpush1.msra.mxu0 %v322
    %641 = vmatprep.subr.mxu0 %v319
    %642 = vmatpush1.msra.mxu0 %v318
    %643 = vmatprep.subr.mxu0 %v315
    %644 = vmatpush1.msra.mxu0 %v314
    %645 = vmatprep.subr.mxu0 %v311
    %646 = vmatpush1.msra.mxu0 %v310
    %647 = vmatprep.subr.mxu0 %v307
    %648 = vmatpush1.msra.mxu0 %v306
    %649 = vmatprep.subr.mxu0 %v303
    %650 = vmatpush1.msra.mxu0 %v302
    %651 = vmatprep.subr.mxu0 %v299
    %652 = vmatpush1.msra.mxu0 %v298
    %653 = vmatprep.subr.mxu0 %v295
    %654 = vmatpush1.msra.mxu0 %v294
    %655 = vmatprep.subr.mxu0 %v291
    %656 = vmatpush1.msra.mxu0 %v290
    %657 = vmatprep.subr.mxu0 %v287
    %658 = vmatpush1.msra.mxu0 %v286
    %659 = vmatprep.subr.mxu0 0.0
    %660 = vmatpush2.msra.mxu0 0.0
    %661 = vmatprep.subr.mxu0 0.0
    %662 = vmatpush2.msra.mxu0 0.0
    %663 = vmatprep.subr.mxu0 0.0
    %664 = vmatpush2.msra.mxu0 0.0
    %665 = vmatprep.subr.mxu0 0.0
    %666 = vmatpush2.msra.mxu0 0.0
    %667 = vmatprep.subr.mxu0 0.0
    %668 = vmatpush2.msra.mxu0 0.0
    %669 = vmatprep.subr.mxu0 0.0
    %670 = vmatpush2.msra.mxu0 0.0
    %671 = vmatprep.subr.mxu0 0.0
    %672 = vmatpush2.msra.mxu0 0.0
    %673 = vmatprep.subr.mxu0 0.0
    %674 = vmatpush2.msra.mxu0 0.0
    %675 = vmatprep.subr.mxu0 0.0
    %676 = vmatpush2.msra.mxu0 0.0
    %677 = vmatprep.subr.mxu0 0.0
    %678 = vmatpush2.msra.mxu0 0.0
    %679 = vmatprep.subr.mxu0 0.0
    %680 = vmatpush2.msra.mxu0 0.0
    %681 = vmatprep.subr.mxu0 0.0
    %682 = vmatpush2.msra.mxu0 0.0
    %683 = vmatprep.subr.mxu0 0.0
    %684 = vmatpush2.msra.mxu0 0.0
    %685 = vmatprep.subr.mxu0 0.0
    %686 = vmatpush2.msra.mxu0 0.0
    %687 = vmatprep.subr.mxu0 0.0
    %688 = vmatpush2.msra.mxu0 0.0
    %689 = vmatprep.subr.mxu0 0.0
    %690 = vmatpush2.msra.mxu0 0.0
    %691 = vmatprep.mubr.f32.mxu0 0.0
    %692 = vmatmul.mubr.f32.gmra.mxu0 %v553
    %v693 = vpop.f32.mrf.mxu0
    %v694 = vadd.f32 0.0, %v693
    %v695 = vpop.f32.mrf.mxu0
    %v696 = vadd.f32 0.0, %v695
    %697 = vdwg.mxu0
    %v702 = vcombine.low %v623, %v625
    %v703 = vcombine.low %v694, %v696
    %v705 = vunpack.c.l.s4 1966171168
    %v706 = vunpack.c.0.s8 %v705
    %v707 = vlaneseq
    %v708 = vshrl.u32 %v707, 7
    %v709 = vsub.s32 %v706, %v708
    %v710 = vrot.slane %v702, %v709
    %v712 = vunpack.c.l.s4 1966171168
    %v713 = vunpack.c.0.s8 %v712
    %v714 = vlaneseq
    %v715 = vshrl.u32 %v714, 7
    %v716 = vsub.s32 %v713, %v715
    %v717 = vrot.slane %v703, %v716
    %v718 = vcombine.low %v710, %v717
    %v720 = vunpack.c.l.s4 1966171168
    %v721 = vunpack.c.0.s8 %v720
    %v722 = vlaneseq
    %v723 = vshrl.u32 %v722, 7
    %v724 = vsub.s32 %v721, %v723
    %v725 = vrot.slane %v718, %v724
    %v727 = vadd.f32 %v555, %v725
    %v728 = vxor.u32 %v727, 2147483648
    %v729 = vmul.f32 %v728, 1.442695
    %v730 = vpow.pop %v729
    %v731 = vadd.f32 %v730, 1.0
    %v732 = vrcp.pop %v731
    %v733 = vmul.f32 1.0, %v732
    %v735 = vrot.slane %v727, 1
    %v737 = vxor.u32 %v735, 2147483648
    %v738 = vmul.f32 %v737, 1.442695
    %v739 = vpow.pop %v738
    %v740 = vadd.f32 %v739, 1.0
    %v741 = vrcp.pop %v740
    %v742 = vmul.f32 1.0, %v741
    %v743 = vrot.slane %v727, 2
    %v745 = vtanh.pop %v743
    %v746 = vrot.slane %v727, 3
    %v748 = vxor.u32 %v746, 2147483648
    %v749 = vmul.f32 %v748, 1.442695
    %v750 = vpow.pop %v749
    %v751 = vadd.f32 %v750, 1.0
    %v752 = vrcp.pop %v751
    %v753 = vmul.f32 1.0, %v752
    %v754 = vmul.f32 %v551, %v733
    %v755 = vmul.f32 %v745, %v742
    %v756 = vadd.f32 %v754, %v755
    %v757 = vtanh.pop %v756
    %v758 = vmul.f32 %v757, %v753
    %s759 = scalar_lea.vmem [#allocation2], 2
    %v760 = vld [vmem:[%s759] ss:$8 sm:$0xf]
    %761 = vmatprep.subr.mxu0 %v345
    %762 = vmatpush1.msra.mxu0 %v344
    %763 = vmatprep.subr.mxu0 %v341
    %764 = vmatpush1.msra.mxu0 %v340
    %765 = vmatprep.subr.mxu0 %v337
    %766 = vmatpush1.msra.mxu0 %v336
    %767 = vmatprep.subr.mxu0 %v333
    %768 = vmatpush1.msra.mxu0 %v332
    %769 = vmatprep.subr.mxu0 %v329
    %770 = vmatpush1.msra.mxu0 %v328
    %771 = vmatprep.subr.mxu0 %v325
    %772 = vmatpush1.msra.mxu0 %v324
    %773 = vmatprep.subr.mxu0 %v321
    %774 = vmatpush1.msra.mxu0 %v320
    %775 = vmatprep.subr.mxu0 %v317
    %776 = vmatpush1.msra.mxu0 %v316
    %777 = vmatprep.subr.mxu0 %v313
    %778 = vmatpush1.msra.mxu0 %v312
    %779 = vmatprep.subr.mxu0 %v309
    %780 = vmatpush1.msra.mxu0 %v308
    %781 = vmatprep.subr.mxu0 %v305
    %782 = vmatpush1.msra.mxu0 %v304
    %783 = vmatprep.subr.mxu0 %v301
    %784 = vmatpush1.msra.mxu0 %v300
    %785 = vmatprep.subr.mxu0 %v297
    %786 = vmatpush1.msra.mxu0 %v296
    %787 = vmatprep.subr.mxu0 %v293
    %788 = vmatpush1.msra.mxu0 %v292
    %789 = vmatprep.subr.mxu0 %v289
    %790 = vmatpush1.msra.mxu0 %v288
    %791 = vmatprep.subr.mxu0 %v285
    %792 = vmatpush1.msra.mxu0 %v284
    %793 = vmatprep.subr.mxu0 0.0
    %794 = vmatpush2.msra.mxu0 0.0
    %795 = vmatprep.subr.mxu0 0.0
    %796 = vmatpush2.msra.mxu0 0.0
    %797 = vmatprep.subr.mxu0 0.0
    %798 = vmatpush2.msra.mxu0 0.0
    %799 = vmatprep.subr.mxu0 0.0
    %800 = vmatpush2.msra.mxu0 0.0
    %801 = vmatprep.subr.mxu0 0.0
    %802 = vmatpush2.msra.mxu0 0.0
    %803 = vmatprep.subr.mxu0 0.0
    %804 = vmatpush2.msra.mxu0 0.0
    %805 = vmatprep.subr.mxu0 0.0
    %806 = vmatpush2.msra.mxu0 0.0
    %807 = vmatprep.subr.mxu0 0.0
    %808 = vmatpush2.msra.mxu0 0.0
    %809 = vmatprep.subr.mxu0 0.0
    %810 = vmatpush2.msra.mxu0 0.0
    %811 = vmatprep.subr.mxu0 0.0
    %812 = vmatpush2.msra.mxu0 0.0
    %813 = vmatprep.subr.mxu0 0.0
    %814 = vmatpush2.msra.mxu0 0.0
    %815 = vmatprep.subr.mxu0 0.0
    %816 = vmatpush2.msra.mxu0 0.0
    %817 = vmatprep.subr.mxu0 0.0
    %818 = vmatpush2.msra.mxu0 0.0
    %819 = vmatprep.subr.mxu0 0.0
    %820 = vmatpush2.msra.mxu0 0.0
    %821 = vmatprep.subr.mxu0 0.0
    %822 = vmatpush2.msra.mxu0 0.0
    %823 = vmatprep.subr.mxu0 0.0
    %824 = vmatpush2.msra.mxu0 0.0
    %825 = vmatprep.mubr.f32.mxu0 0.0
    %826 = vmatmul.mubr.f32.gmra.mxu0 %v758
    %v827 = vpop.f32.mrf.mxu0
    %v828 = vadd.f32 0.0, %v827
    %v829 = vpop.f32.mrf.mxu0
    %v830 = vadd.f32 0.0, %v829
    %831 = vdwg.mxu0
    %832 = vmatprep.subr.mxu0 %v347
    %833 = vmatpush1.msra.mxu0 %v346
    %834 = vmatprep.subr.mxu0 %v343
    %835 = vmatpush1.msra.mxu0 %v342
    %836 = vmatprep.subr.mxu0 %v339
    %837 = vmatpush1.msra.mxu0 %v338
    %838 = vmatprep.subr.mxu0 %v335
    %839 = vmatpush1.msra.mxu0 %v334
    %840 = vmatprep.subr.mxu0 %v331
    %841 = vmatpush1.msra.mxu0 %v330
    %842 = vmatprep.subr.mxu0 %v327
    %843 = vmatpush1.msra.mxu0 %v326
    %844 = vmatprep.subr.mxu0 %v323
    %845 = vmatpush1.msra.mxu0 %v322
    %846 = vmatprep.subr.mxu0 %v319
    %847 = vmatpush1.msra.mxu0 %v318
    %848 = vmatprep.subr.mxu0 %v315
    %849 = vmatpush1.msra.mxu0 %v314
    %850 = vmatprep.subr.mxu0 %v311
    %851 = vmatpush1.msra.mxu0 %v310
    %852 = vmatprep.subr.mxu0 %v307
    %853 = vmatpush1.msra.mxu0 %v306
    %854 = vmatprep.subr.mxu0 %v303
    %855 = vmatpush1.msra.mxu0 %v302
    %856 = vmatprep.subr.mxu0 %v299
    %857 = vmatpush1.msra.mxu0 %v298
    %858 = vmatprep.subr.mxu0 %v295
    %859 = vmatpush1.msra.mxu0 %v294
    %860 = vmatprep.subr.mxu0 %v291
    %861 = vmatpush1.msra.mxu0 %v290
    %862 = vmatprep.subr.mxu0 %v287
    %863 = vmatpush1.msra.mxu0 %v286
    %864 = vmatprep.subr.mxu0 0.0
    %865 = vmatpush2.msra.mxu0 0.0
    %866 = vmatprep.subr.mxu0 0.0
    %867 = vmatpush2.msra.mxu0 0.0
    %868 = vmatprep.subr.mxu0 0.0
    %869 = vmatpush2.msra.mxu0 0.0
    %870 = vmatprep.subr.mxu0 0.0
    %871 = vmatpush2.msra.mxu0 0.0
    %872 = vmatprep.subr.mxu0 0.0
    %873 = vmatpush2.msra.mxu0 0.0
    %874 = vmatprep.subr.mxu0 0.0
    %875 = vmatpush2.msra.mxu0 0.0
    %876 = vmatprep.subr.mxu0 0.0
    %877 = vmatpush2.msra.mxu0 0.0
    %878 = vmatprep.subr.mxu0 0.0
    %879 = vmatpush2.msra.mxu0 0.0
    %880 = vmatprep.subr.mxu0 0.0
    %881 = vmatpush2.msra.mxu0 0.0
    %882 = vmatprep.subr.mxu0 0.0
    %883 = vmatpush2.msra.mxu0 0.0
    %884 = vmatprep.subr.mxu0 0.0
    %885 = vmatpush2.msra.mxu0 0.0
    %886 = vmatprep.subr.mxu0 0.0
    %887 = vmatpush2.msra.mxu0 0.0
    %888 = vmatprep.subr.mxu0 0.0
    %889 = vmatpush2.msra.mxu0 0.0
    %890 = vmatprep.subr.mxu0 0.0
    %891 = vmatpush2.msra.mxu0 0.0
    %892 = vmatprep.subr.mxu0 0.0
    %893 = vmatpush2.msra.mxu0 0.0
    %894 = vmatprep.subr.mxu0 0.0
    %895 = vmatpush2.msra.mxu0 0.0
    %896 = vmatprep.mubr.f32.mxu0 0.0
    %897 = vmatmul.mubr.f32.gmra.mxu0 %v758
    %v898 = vpop.f32.mrf.mxu0
    %v899 = vadd.f32 0.0, %v898
    %v900 = vpop.f32.mrf.mxu0
    %v901 = vadd.f32 0.0, %v900
    %902 = vdwg.mxu0
    %v907 = vcombine.low %v828, %v830
    %v908 = vcombine.low %v899, %v901
    %v910 = vunpack.c.l.s4 1966171168
    %v911 = vunpack.c.0.s8 %v910
    %v912 = vlaneseq
    %v913 = vshrl.u32 %v912, 7
    %v914 = vsub.s32 %v911, %v913
    %v915 = vrot.slane %v907, %v914
    %v917 = vunpack.c.l.s4 1966171168
    %v918 = vunpack.c.0.s8 %v917
    %v919 = vlaneseq
    %v920 = vshrl.u32 %v919, 7
    %v921 = vsub.s32 %v918, %v920
    %v922 = vrot.slane %v908, %v921
    %v923 = vcombine.low %v915, %v922
    %v925 = vunpack.c.l.s4 1966171168
    %v926 = vunpack.c.0.s8 %v925
    %v927 = vlaneseq
    %v928 = vshrl.u32 %v927, 7
    %v929 = vsub.s32 %v926, %v928
    %v930 = vrot.slane %v923, %v929
    %v932 = vadd.f32 %v760, %v930
    %v933 = vxor.u32 %v932, 2147483648
    %v934 = vmul.f32 %v933, 1.442695
    %v935 = vpow.pop %v934
    %v936 = vadd.f32 %v935, 1.0
    %v937 = vrcp.pop %v936
    %v938 = vmul.f32 1.0, %v937
    %v940 = vrot.slane %v932, 1
    %v942 = vxor.u32 %v940, 2147483648
    %v943 = vmul.f32 %v942, 1.442695
    %v944 = vpow.pop %v943
    %v945 = vadd.f32 %v944, 1.0
    %v946 = vrcp.pop %v945
    %v947 = vmul.f32 1.0, %v946
    %v948 = vrot.slane %v932, 2
    %v950 = vtanh.pop %v948
    %v951 = vrot.slane %v932, 3
    %v953 = vxor.u32 %v951, 2147483648
    %v954 = vmul.f32 %v953, 1.442695
    %v955 = vpow.pop %v954
    %v956 = vadd.f32 %v955, 1.0
    %v957 = vrcp.pop %v956
    %v958 = vmul.f32 1.0, %v957
    %v959 = vmul.f32 %v756, %v938
    %v960 = vmul.f32 %v950, %v947
    %v961 = vadd.f32 %v959, %v960
    %v962 = vtanh.pop %v961
    %v963 = vmul.f32 %v962, %v958
    %s964 = scalar_lea.vmem [#allocation2], 3
    %v965 = vld [vmem:[%s964] ss:$8 sm:$0xf]
    %966 = vmatprep.subr.mxu0 %v345
    %967 = vmatpush1.msra.mxu0 %v344
    %968 = vmatprep.subr.mxu0 %v341
    %969 = vmatpush1.msra.mxu0 %v340
    %970 = vmatprep.subr.mxu0 %v337
    %971 = vmatpush1.msra.mxu0 %v336
    %972 = vmatprep.subr.mxu0 %v333
    %973 = vmatpush1.msra.mxu0 %v332
    %974 = vmatprep.subr.mxu0 %v329
    %975 = vmatpush1.msra.mxu0 %v328
    %976 = vmatprep.subr.mxu0 %v325
    %977 = vmatpush1.msra.mxu0 %v324
    %978 = vmatprep.subr.mxu0 %v321
    %979 = vmatpush1.msra.mxu0 %v320
    %980 = vmatprep.subr.mxu0 %v317
    %981 = vmatpush1.msra.mxu0 %v316
    %982 = vmatprep.subr.mxu0 %v313
    %983 = vmatpush1.msra.mxu0 %v312
    %984 = vmatprep.subr.mxu0 %v309
    %985 = vmatpush1.msra.mxu0 %v308
    %986 = vmatprep.subr.mxu0 %v305
    %987 = vmatpush1.msra.mxu0 %v304
    %988 = vmatprep.subr.mxu0 %v301
    %989 = vmatpush1.msra.mxu0 %v300
    %990 = vmatprep.subr.mxu0 %v297
    %991 = vmatpush1.msra.mxu0 %v296
    %992 = vmatprep.subr.mxu0 %v293
    %993 = vmatpush1.msra.mxu0 %v292
    %994 = vmatprep.subr.mxu0 %v289
    %995 = vmatpush1.msra.mxu0 %v288
    %996 = vmatprep.subr.mxu0 %v285
    %997 = vmatpush1.msra.mxu0 %v284
    %998 = vmatprep.subr.mxu0 0.0
    %999 = vmatpush2.msra.mxu0 0.0
    %1000 = vmatprep.subr.mxu0 0.0
    %1001 = vmatpush2.msra.mxu0 0.0
    %1002 = vmatprep.subr.mxu0 0.0
    %1003 = vmatpush2.msra.mxu0 0.0
    %1004 = vmatprep.subr.mxu0 0.0
    %1005 = vmatpush2.msra.mxu0 0.0
    %1006 = vmatprep.subr.mxu0 0.0
    %1007 = vmatpush2.msra.mxu0 0.0
    %1008 = vmatprep.subr.mxu0 0.0
    %1009 = vmatpush2.msra.mxu0 0.0
    %1010 = vmatprep.subr.mxu0 0.0
    %1011 = vmatpush2.msra.mxu0 0.0
    %1012 = vmatprep.subr.mxu0 0.0
    %1013 = vmatpush2.msra.mxu0 0.0
    %1014 = vmatprep.subr.mxu0 0.0
    %1015 = vmatpush2.msra.mxu0 0.0
    %1016 = vmatprep.subr.mxu0 0.0
    %1017 = vmatpush2.msra.mxu0 0.0
    %1018 = vmatprep.subr.mxu0 0.0
    %1019 = vmatpush2.msra.mxu0 0.0
    %1020 = vmatprep.subr.mxu0 0.0
    %1021 = vmatpush2.msra.mxu0 0.0
    %1022 = vmatprep.subr.mxu0 0.0
    %1023 = vmatpush2.msra.mxu0 0.0
    %1024 = vmatprep.subr.mxu0 0.0
    %1025 = vmatpush2.msra.mxu0 0.0
    %1026 = vmatprep.subr.mxu0 0.0
    %1027 = vmatpush2.msra.mxu0 0.0
    %1028 = vmatprep.subr.mxu0 0.0
    %1029 = vmatpush2.msra.mxu0 0.0
    %1030 = vmatprep.mubr.f32.mxu0 0.0
    %1031 = vmatmul.mubr.f32.gmra.mxu0 %v963
    %v1032 = vpop.f32.mrf.mxu0
    %v1033 = vadd.f32 0.0, %v1032
    %v1034 = vpop.f32.mrf.mxu0
    %v1035 = vadd.f32 0.0, %v1034
    %1036 = vdwg.mxu0
    %1037 = vmatprep.subr.mxu0 %v347
    %1038 = vmatpush1.msra.mxu0 %v346
    %1039 = vmatprep.subr.mxu0 %v343
    %1040 = vmatpush1.msra.mxu0 %v342
    %1041 = vmatprep.subr.mxu0 %v339
    %1042 = vmatpush1.msra.mxu0 %v338
    %1043 = vmatprep.subr.mxu0 %v335
    %1044 = vmatpush1.msra.mxu0 %v334
    %1045 = vmatprep.subr.mxu0 %v331
    %1046 = vmatpush1.msra.mxu0 %v330
    %1047 = vmatprep.subr.mxu0 %v327
    %1048 = vmatpush1.msra.mxu0 %v326
    %1049 = vmatprep.subr.mxu0 %v323
    %1050 = vmatpush1.msra.mxu0 %v322
    %1051 = vmatprep.subr.mxu0 %v319
    %1052 = vmatpush1.msra.mxu0 %v318
    %1053 = vmatprep.subr.mxu0 %v315
    %1054 = vmatpush1.msra.mxu0 %v314
    %1055 = vmatprep.subr.mxu0 %v311
    %1056 = vmatpush1.msra.mxu0 %v310
    %1057 = vmatprep.subr.mxu0 %v307
    %1058 = vmatpush1.msra.mxu0 %v306
    %1059 = vmatprep.subr.mxu0 %v303
    %1060 = vmatpush1.msra.mxu0 %v302
    %1061 = vmatprep.subr.mxu0 %v299
    %1062 = vmatpush1.msra.mxu0 %v298
    %1063 = vmatprep.subr.mxu0 %v295
    %1064 = vmatpush1.msra.mxu0 %v294
    %1065 = vmatprep.subr.mxu0 %v291
    %1066 = vmatpush1.msra.mxu0 %v290
    %1067 = vmatprep.subr.mxu0 %v287
    %1068 = vmatpush1.msra.mxu0 %v286
    %1069 = vmatprep.subr.mxu0 0.0
    %1070 = vmatpush2.msra.mxu0 0.0
    %1071 = vmatprep.subr.mxu0 0.0
    %1072 = vmatpush2.msra.mxu0 0.0
    %1073 = vmatprep.subr.mxu0 0.0
    %1074 = vmatpush2.msra.mxu0 0.0
    %1075 = vmatprep.subr.mxu0 0.0
    %1076 = vmatpush2.msra.mxu0 0.0
    %1077 = vmatprep.subr.mxu0 0.0
    %1078 = vmatpush2.msra.mxu0 0.0
    %1079 = vmatprep.subr.mxu0 0.0
    %1080 = vmatpush2.msra.mxu0 0.0
    %1081 = vmatprep.subr.mxu0 0.0
    %1082 = vmatpush2.msra.mxu0 0.0
    %1083 = vmatprep.subr.mxu0 0.0
    %1084 = vmatpush2.msra.mxu0 0.0
    %1085 = vmatprep.subr.mxu0 0.0
    %1086 = vmatpush2.msra.mxu0 0.0
    %1087 = vmatprep.subr.mxu0 0.0
    %1088 = vmatpush2.msra.mxu0 0.0
    %1089 = vmatprep.subr.mxu0 0.0
    %1090 = vmatpush2.msra.mxu0 0.0
    %1091 = vmatprep.subr.mxu0 0.0
    %1092 = vmatpush2.msra.mxu0 0.0
    %1093 = vmatprep.subr.mxu0 0.0
    %1094 = vmatpush2.msra.mxu0 0.0
    %1095 = vmatprep.subr.mxu0 0.0
    %1096 = vmatpush2.msra.mxu0 0.0
    %1097 = vmatprep.subr.mxu0 0.0
    %1098 = vmatpush2.msra.mxu0 0.0
    %1099 = vmatprep.subr.mxu0 0.0
    %1100 = vmatpush2.msra.mxu0 0.0
    %1101 = vmatprep.mubr.f32.mxu0 0.0
    %1102 = vmatmul.mubr.f32.gmra.mxu0 %v963
    %v1103 = vpop.f32.mrf.mxu0
    %v1104 = vadd.f32 0.0, %v1103
    %v1105 = vpop.f32.mrf.mxu0
    %v1106 = vadd.f32 0.0, %v1105
    %1107 = vdwg.mxu0
    %v1112 = vcombine.low %v1033, %v1035
    %v1113 = vcombine.low %v1104, %v1106
    %v1115 = vunpack.c.l.s4 1966171168
    %v1116 = vunpack.c.0.s8 %v1115
    %v1117 = vlaneseq
    %v1118 = vshrl.u32 %v1117, 7
    %v1119 = vsub.s32 %v1116, %v1118
    %v1120 = vrot.slane %v1112, %v1119
    %v1122 = vunpack.c.l.s4 1966171168
    %v1123 = vunpack.c.0.s8 %v1122
    %v1124 = vlaneseq
    %v1125 = vshrl.u32 %v1124, 7
    %v1126 = vsub.s32 %v1123, %v1125
    %v1127 = vrot.slane %v1113, %v1126
    %v1128 = vcombine.low %v1120, %v1127
    %v1130 = vunpack.c.l.s4 1966171168
    %v1131 = vunpack.c.0.s8 %v1130
    %v1132 = vlaneseq
    %v1133 = vshrl.u32 %v1132, 7
    %v1134 = vsub.s32 %v1131, %v1133
    %v1135 = vrot.slane %v1128, %v1134
    %v1137 = vadd.f32 %v965, %v1135
    %v1138 = vxor.u32 %v1137, 2147483648
    %v1139 = vmul.f32 %v1138, 1.442695
    %v1140 = vpow.pop %v1139
    %v1141 = vadd.f32 %v1140, 1.0
    %v1142 = vrcp.pop %v1141
    %v1143 = vmul.f32 1.0, %v1142
    %v1145 = vrot.slane %v1137, 1
    %v1147 = vxor.u32 %v1145, 2147483648
    %v1148 = vmul.f32 %v1147, 1.442695
    %v1149 = vpow.pop %v1148
    %v1150 = vadd.f32 %v1149, 1.0
    %v1151 = vrcp.pop %v1150
    %v1152 = vmul.f32 1.0, %v1151
    %v1153 = vrot.slane %v1137, 2
    %v1155 = vtanh.pop %v1153
    %v1156 = vrot.slane %v1137, 3
    %v1158 = vxor.u32 %v1156, 2147483648
    %v1159 = vmul.f32 %v1158, 1.442695
    %v1160 = vpow.pop %v1159
    %v1161 = vadd.f32 %v1160, 1.0
    %v1162 = vrcp.pop %v1161
    %v1163 = vmul.f32 1.0, %v1162
    %v1164 = vmul.f32 %v961, %v1143
    %v1165 = vmul.f32 %v1155, %v1152
    %v1166 = vadd.f32 %v1164, %v1165
    %v1167 = vtanh.pop %v1166
    %v1168 = vmul.f32 %v1167, %v1163
    %s1169 = scalar_lea.vmem [#allocation2], 4
    %v1170 = vld [vmem:[%s1169] ss:$8 sm:$0xf]
    %1171 = vmatprep.subr.mxu0 %v345
    %1172 = vmatpush1.msra.mxu0 %v344
    %1173 = vmatprep.subr.mxu0 %v341
    %1174 = vmatpush1.msra.mxu0 %v340
    %1175 = vmatprep.subr.mxu0 %v337
    %1176 = vmatpush1.msra.mxu0 %v336
    %1177 = vmatprep.subr.mxu0 %v333
    %1178 = vmatpush1.msra.mxu0 %v332
    %1179 = vmatprep.subr.mxu0 %v329
    %1180 = vmatpush1.msra.mxu0 %v328
    %1181 = vmatprep.subr.mxu0 %v325
    %1182 = vmatpush1.msra.mxu0 %v324
    %1183 = vmatprep.subr.mxu0 %v321
    %1184 = vmatpush1.msra.mxu0 %v320
    %1185 = vmatprep.subr.mxu0 %v317
    %1186 = vmatpush1.msra.mxu0 %v316
    %1187 = vmatprep.subr.mxu0 %v313
    %1188 = vmatpush1.msra.mxu0 %v312
    %1189 = vmatprep.subr.mxu0 %v309
    %1190 = vmatpush1.msra.mxu0 %v308
    %1191 = vmatprep.subr.mxu0 %v305
    %1192 = vmatpush1.msra.mxu0 %v304
    %1193 = vmatprep.subr.mxu0 %v301
    %1194 = vmatpush1.msra.mxu0 %v300
    %1195 = vmatprep.subr.mxu0 %v297
    %1196 = vmatpush1.msra.mxu0 %v296
    %1197 = vmatprep.subr.mxu0 %v293
    %1198 = vmatpush1.msra.mxu0 %v292
    %1199 = vmatprep.subr.mxu0 %v289
    %1200 = vmatpush1.msra.mxu0 %v288
    %1201 = vmatprep.subr.mxu0 %v285
    %1202 = vmatpush1.msra.mxu0 %v284
    %1203 = vmatprep.subr.mxu0 0.0
    %1204 = vmatpush2.msra.mxu0 0.0
    %1205 = vmatprep.subr.mxu0 0.0
    %1206 = vmatpush2.msra.mxu0 0.0
    %1207 = vmatprep.subr.mxu0 0.0
    %1208 = vmatpush2.msra.mxu0 0.0
    %1209 = vmatprep.subr.mxu0 0.0
    %1210 = vmatpush2.msra.mxu0 0.0
    %1211 = vmatprep.subr.mxu0 0.0
    %1212 = vmatpush2.msra.mxu0 0.0
    %1213 = vmatprep.subr.mxu0 0.0
    %1214 = vmatpush2.msra.mxu0 0.0
    %1215 = vmatprep.subr.mxu0 0.0
    %1216 = vmatpush2.msra.mxu0 0.0
    %1217 = vmatprep.subr.mxu0 0.0
    %1218 = vmatpush2.msra.mxu0 0.0
    %1219 = vmatprep.subr.mxu0 0.0
    %1220 = vmatpush2.msra.mxu0 0.0
    %1221 = vmatprep.subr.mxu0 0.0
    %1222 = vmatpush2.msra.mxu0 0.0
    %1223 = vmatprep.subr.mxu0 0.0
    %1224 = vmatpush2.msra.mxu0 0.0
    %1225 = vmatprep.subr.mxu0 0.0
    %1226 = vmatpush2.msra.mxu0 0.0
    %1227 = vmatprep.subr.mxu0 0.0
    %1228 = vmatpush2.msra.mxu0 0.0
    %1229 = vmatprep.subr.mxu0 0.0
    %1230 = vmatpush2.msra.mxu0 0.0
    %1231 = vmatprep.subr.mxu0 0.0
    %1232 = vmatpush2.msra.mxu0 0.0
    %1233 = vmatprep.subr.mxu0 0.0
    %1234 = vmatpush2.msra.mxu0 0.0
    %1235 = vmatprep.mubr.f32.mxu0 0.0
    %1236 = vmatmul.mubr.f32.gmra.mxu0 %v1168
    %v1237 = vpop.f32.mrf.mxu0
    %v1238 = vadd.f32 0.0, %v1237
    %v1239 = vpop.f32.mrf.mxu0
    %v1240 = vadd.f32 0.0, %v1239
    %1241 = vdwg.mxu0
    %1242 = vmatprep.subr.mxu0 %v347
    %1243 = vmatpush1.msra.mxu0 %v346
    %1244 = vmatprep.subr.mxu0 %v343
    %1245 = vmatpush1.msra.mxu0 %v342
    %1246 = vmatprep.subr.mxu0 %v339
    %1247 = vmatpush1.msra.mxu0 %v338
    %1248 = vmatprep.subr.mxu0 %v335
    %1249 = vmatpush1.msra.mxu0 %v334
    %1250 = vmatprep.subr.mxu0 %v331
    %1251 = vmatpush1.msra.mxu0 %v330
    %1252 = vmatprep.subr.mxu0 %v327
    %1253 = vmatpush1.msra.mxu0 %v326
    %1254 = vmatprep.subr.mxu0 %v323
    %1255 = vmatpush1.msra.mxu0 %v322
    %1256 = vmatprep.subr.mxu0 %v319
    %1257 = vmatpush1.msra.mxu0 %v318
    %1258 = vmatprep.subr.mxu0 %v315
    %1259 = vmatpush1.msra.mxu0 %v314
    %1260 = vmatprep.subr.mxu0 %v311
    %1261 = vmatpush1.msra.mxu0 %v310
    %1262 = vmatprep.subr.mxu0 %v307
    %1263 = vmatpush1.msra.mxu0 %v306
    %1264 = vmatprep.subr.mxu0 %v303
    %1265 = vmatpush1.msra.mxu0 %v302
    %1266 = vmatprep.subr.mxu0 %v299
    %1267 = vmatpush1.msra.mxu0 %v298
    %1268 = vmatprep.subr.mxu0 %v295
    %1269 = vmatpush1.msra.mxu0 %v294
    %1270 = vmatprep.subr.mxu0 %v291
    %1271 = vmatpush1.msra.mxu0 %v290
    %1272 = vmatprep.subr.mxu0 %v287
    %1273 = vmatpush1.msra.mxu0 %v286
    %1274 = vmatprep.subr.mxu0 0.0
    %1275 = vmatpush2.msra.mxu0 0.0
    %1276 = vmatprep.subr.mxu0 0.0
    %1277 = vmatpush2.msra.mxu0 0.0
    %1278 = vmatprep.subr.mxu0 0.0
    %1279 = vmatpush2.msra.mxu0 0.0
    %1280 = vmatprep.subr.mxu0 0.0
    %1281 = vmatpush2.msra.mxu0 0.0
    %1282 = vmatprep.subr.mxu0 0.0
    %1283 = vmatpush2.msra.mxu0 0.0
    %1284 = vmatprep.subr.mxu0 0.0
    %1285 = vmatpush2.msra.mxu0 0.0
    %1286 = vmatprep.subr.mxu0 0.0
    %1287 = vmatpush2.msra.mxu0 0.0
    %1288 = vmatprep.subr.mxu0 0.0
    %1289 = vmatpush2.msra.mxu0 0.0
    %1290 = vmatprep.subr.mxu0 0.0
    %1291 = vmatpush2.msra.mxu0 0.0
    %1292 = vmatprep.subr.mxu0 0.0
    %1293 = vmatpush2.msra.mxu0 0.0
    %1294 = vmatprep.subr.mxu0 0.0
    %1295 = vmatpush2.msra.mxu0 0.0
    %1296 = vmatprep.subr.mxu0 0.0
    %1297 = vmatpush2.msra.mxu0 0.0
    %1298 = vmatprep.subr.mxu0 0.0
    %1299 = vmatpush2.msra.mxu0 0.0
    %1300 = vmatprep.subr.mxu0 0.0
    %1301 = vmatpush2.msra.mxu0 0.0
    %1302 = vmatprep.subr.mxu0 0.0
    %1303 = vmatpush2.msra.mxu0 0.0
    %1304 = vmatprep.subr.mxu0 0.0
    %1305 = vmatpush2.msra.mxu0 0.0
    %1306 = vmatprep.mubr.f32.mxu0 0.0
    %1307 = vmatmul.mubr.f32.gmra.mxu0 %v1168
    %v1308 = vpop.f32.mrf.mxu0
    %v1309 = vadd.f32 0.0, %v1308
    %v1310 = vpop.f32.mrf.mxu0
    %v1311 = vadd.f32 0.0, %v1310
    %1312 = vdwg.mxu0
    %v1317 = vcombine.low %v1238, %v1240
    %v1318 = vcombine.low %v1309, %v1311
    %v1320 = vunpack.c.l.s4 1966171168
    %v1321 = vunpack.c.0.s8 %v1320
    %v1322 = vlaneseq
    %v1323 = vshrl.u32 %v1322, 7
    %v1324 = vsub.s32 %v1321, %v1323
    %v1325 = vrot.slane %v1317, %v1324
    %v1327 = vunpack.c.l.s4 1966171168
    %v1328 = vunpack.c.0.s8 %v1327
    %v1329 = vlaneseq
    %v1330 = vshrl.u32 %v1329, 7
    %v1331 = vsub.s32 %v1328, %v1330
    %v1332 = vrot.slane %v1318, %v1331
    %v1333 = vcombine.low %v1325, %v1332
    %v1335 = vunpack.c.l.s4 1966171168
    %v1336 = vunpack.c.0.s8 %v1335
    %v1337 = vlaneseq
    %v1338 = vshrl.u32 %v1337, 7
    %v1339 = vsub.s32 %v1336, %v1338
    %v1340 = vrot.slane %v1333, %v1339
    %v1342 = vadd.f32 %v1170, %v1340
    %v1343 = vxor.u32 %v1342, 2147483648
    %v1344 = vmul.f32 %v1343, 1.442695
    %v1345 = vpow.pop %v1344
    %v1346 = vadd.f32 %v1345, 1.0
    %v1347 = vrcp.pop %v1346
    %v1348 = vmul.f32 1.0, %v1347
    %v1350 = vrot.slane %v1342, 1
    %v1352 = vxor.u32 %v1350, 2147483648
    %v1353 = vmul.f32 %v1352, 1.442695
    %v1354 = vpow.pop %v1353
    %v1355 = vadd.f32 %v1354, 1.0
    %v1356 = vrcp.pop %v1355
    %v1357 = vmul.f32 1.0, %v1356
    %v1358 = vrot.slane %v1342, 2
    %v1360 = vtanh.pop %v1358
    %v1361 = vrot.slane %v1342, 3
    %v1363 = vxor.u32 %v1361, 2147483648
    %v1364 = vmul.f32 %v1363, 1.442695
    %v1365 = vpow.pop %v1364
    %v1366 = vadd.f32 %v1365, 1.0
    %v1367 = vrcp.pop %v1366
    %v1368 = vmul.f32 1.0, %v1367
    %v1369 = vmul.f32 %v1166, %v1348
    %v1370 = vmul.f32 %v1360, %v1357
    %v1371 = vadd.f32 %v1369, %v1370
    %v1372 = vtanh.pop %v1371
    %v1373 = vmul.f32 %v1372, %v1368
    %s1374 = scalar_lea.vmem [#allocation2], 5
    %v1375 = vld [vmem:[%s1374] ss:$8 sm:$0xf]
    %1376 = vmatprep.subr.mxu0 %v345
    %1377 = vmatpush1.msra.mxu0 %v344
    %1378 = vmatprep.subr.mxu0 %v341
    %1379 = vmatpush1.msra.mxu0 %v340
    %1380 = vmatprep.subr.mxu0 %v337
    %1381 = vmatpush1.msra.mxu0 %v336
    %1382 = vmatprep.subr.mxu0 %v333
    %1383 = vmatpush1.msra.mxu0 %v332
    %1384 = vmatprep.subr.mxu0 %v329
    %1385 = vmatpush1.msra.mxu0 %v328
    %1386 = vmatprep.subr.mxu0 %v325
    %1387 = vmatpush1.msra.mxu0 %v324
    %1388 = vmatprep.subr.mxu0 %v321
    %1389 = vmatpush1.msra.mxu0 %v320
    %1390 = vmatprep.subr.mxu0 %v317
    %1391 = vmatpush1.msra.mxu0 %v316
    %1392 = vmatprep.subr.mxu0 %v313
    %1393 = vmatpush1.msra.mxu0 %v312
    %1394 = vmatprep.subr.mxu0 %v309
    %1395 = vmatpush1.msra.mxu0 %v308
    %1396 = vmatprep.subr.mxu0 %v305
    %1397 = vmatpush1.msra.mxu0 %v304
    %1398 = vmatprep.subr.mxu0 %v301
    %1399 = vmatpush1.msra.mxu0 %v300
    %1400 = vmatprep.subr.mxu0 %v297
    %1401 = vmatpush1.msra.mxu0 %v296
    %1402 = vmatprep.subr.mxu0 %v293
    %1403 = vmatpush1.msra.mxu0 %v292
    %1404 = vmatprep.subr.mxu0 %v289
    %1405 = vmatpush1.msra.mxu0 %v288
    %1406 = vmatprep.subr.mxu0 %v285
    %1407 = vmatpush1.msra.mxu0 %v284
    %1408 = vmatprep.subr.mxu0 0.0
    %1409 = vmatpush2.msra.mxu0 0.0
    %1410 = vmatprep.subr.mxu0 0.0
    %1411 = vmatpush2.msra.mxu0 0.0
    %1412 = vmatprep.subr.mxu0 0.0
    %1413 = vmatpush2.msra.mxu0 0.0
    %1414 = vmatprep.subr.mxu0 0.0
    %1415 = vmatpush2.msra.mxu0 0.0
    %1416 = vmatprep.subr.mxu0 0.0
    %1417 = vmatpush2.msra.mxu0 0.0
    %1418 = vmatprep.subr.mxu0 0.0
    %1419 = vmatpush2.msra.mxu0 0.0
    %1420 = vmatprep.subr.mxu0 0.0
    %1421 = vmatpush2.msra.mxu0 0.0
    %1422 = vmatprep.subr.mxu0 0.0
    %1423 = vmatpush2.msra.mxu0 0.0
    %1424 = vmatprep.subr.mxu0 0.0
    %1425 = vmatpush2.msra.mxu0 0.0
    %1426 = vmatprep.subr.mxu0 0.0
    %1427 = vmatpush2.msra.mxu0 0.0
    %1428 = vmatprep.subr.mxu0 0.0
    %1429 = vmatpush2.msra.mxu0 0.0
    %1430 = vmatprep.subr.mxu0 0.0
    %1431 = vmatpush2.msra.mxu0 0.0
    %1432 = vmatprep.subr.mxu0 0.0
    %1433 = vmatpush2.msra.mxu0 0.0
    %1434 = vmatprep.subr.mxu0 0.0
    %1435 = vmatpush2.msra.mxu0 0.0
    %1436 = vmatprep.subr.mxu0 0.0
    %1437 = vmatpush2.msra.mxu0 0.0
    %1438 = vmatprep.subr.mxu0 0.0
    %1439 = vmatpush2.msra.mxu0 0.0
    %1440 = vmatprep.mubr.f32.mxu0 0.0
    %1441 = vmatmul.mubr.f32.gmra.mxu0 %v1373
    %v1442 = vpop.f32.mrf.mxu0
    %v1443 = vadd.f32 0.0, %v1442
    %v1444 = vpop.f32.mrf.mxu0
    %v1445 = vadd.f32 0.0, %v1444
    %1446 = vdwg.mxu0
    %1447 = vmatprep.subr.mxu0 %v347
    %1448 = vmatpush1.msra.mxu0 %v346
    %1449 = vmatprep.subr.mxu0 %v343
    %1450 = vmatpush1.msra.mxu0 %v342
    %1451 = vmatprep.subr.mxu0 %v339
    %1452 = vmatpush1.msra.mxu0 %v338
    %1453 = vmatprep.subr.mxu0 %v335
    %1454 = vmatpush1.msra.mxu0 %v334
    %1455 = vmatprep.subr.mxu0 %v331
    %1456 = vmatpush1.msra.mxu0 %v330
    %1457 = vmatprep.subr.mxu0 %v327
    %1458 = vmatpush1.msra.mxu0 %v326
    %1459 = vmatprep.subr.mxu0 %v323
    %1460 = vmatpush1.msra.mxu0 %v322
    %1461 = vmatprep.subr.mxu0 %v319
    %1462 = vmatpush1.msra.mxu0 %v318
    %1463 = vmatprep.subr.mxu0 %v315
    %1464 = vmatpush1.msra.mxu0 %v314
    %1465 = vmatprep.subr.mxu0 %v311
    %1466 = vmatpush1.msra.mxu0 %v310
    %1467 = vmatprep.subr.mxu0 %v307
    %1468 = vmatpush1.msra.mxu0 %v306
    %1469 = vmatprep.subr.mxu0 %v303
    %1470 = vmatpush1.msra.mxu0 %v302
    %1471 = vmatprep.subr.mxu0 %v299
    %1472 = vmatpush1.msra.mxu0 %v298
    %1473 = vmatprep.subr.mxu0 %v295
    %1474 = vmatpush1.msra.mxu0 %v294
    %1475 = vmatprep.subr.mxu0 %v291
    %1476 = vmatpush1.msra.mxu0 %v290
    %1477 = vmatprep.subr.mxu0 %v287
    %1478 = vmatpush1.msra.mxu0 %v286
    %1479 = vmatprep.subr.mxu0 0.0
    %1480 = vmatpush2.msra.mxu0 0.0
    %1481 = vmatprep.subr.mxu0 0.0
    %1482 = vmatpush2.msra.mxu0 0.0
    %1483 = vmatprep.subr.mxu0 0.0
    %1484 = vmatpush2.msra.mxu0 0.0
    %1485 = vmatprep.subr.mxu0 0.0
    %1486 = vmatpush2.msra.mxu0 0.0
    %1487 = vmatprep.subr.mxu0 0.0
    %1488 = vmatpush2.msra.mxu0 0.0
    %1489 = vmatprep.subr.mxu0 0.0
    %1490 = vmatpush2.msra.mxu0 0.0
    %1491 = vmatprep.subr.mxu0 0.0
    %1492 = vmatpush2.msra.mxu0 0.0
    %1493 = vmatprep.subr.mxu0 0.0
    %1494 = vmatpush2.msra.mxu0 0.0
    %1495 = vmatprep.subr.mxu0 0.0
    %1496 = vmatpush2.msra.mxu0 0.0
    %1497 = vmatprep.subr.mxu0 0.0
    %1498 = vmatpush2.msra.mxu0 0.0
    %1499 = vmatprep.subr.mxu0 0.0
    %1500 = vmatpush2.msra.mxu0 0.0
    %1501 = vmatprep.subr.mxu0 0.0
    %1502 = vmatpush2.msra.mxu0 0.0
    %1503 = vmatprep.subr.mxu0 0.0
    %1504 = vmatpush2.msra.mxu0 0.0
    %1505 = vmatprep.subr.mxu0 0.0
    %1506 = vmatpush2.msra.mxu0 0.0
    %1507 = vmatprep.subr.mxu0 0.0
    %1508 = vmatpush2.msra.mxu0 0.0
    %1509 = vmatprep.subr.mxu0 0.0
    %1510 = vmatpush2.msra.mxu0 0.0
    %1511 = vmatprep.mubr.f32.mxu0 0.0
    %1512 = vmatmul.mubr.f32.gmra.mxu0 %v1373
    %v1513 = vpop.f32.mrf.mxu0
    %v1514 = vadd.f32 0.0, %v1513
    %v1515 = vpop.f32.mrf.mxu0
    %v1516 = vadd.f32 0.0, %v1515
    %1517 = vdwg.mxu0
    %v1522 = vcombine.low %v1443, %v1445
    %v1523 = vcombine.low %v1514, %v1516
    %v1525 = vunpack.c.l.s4 1966171168
    %v1526 = vunpack.c.0.s8 %v1525
    %v1527 = vlaneseq
    %v1528 = vshrl.u32 %v1527, 7
    %v1529 = vsub.s32 %v1526, %v1528
    %v1530 = vrot.slane %v1522, %v1529
    %v1532 = vunpack.c.l.s4 1966171168
    %v1533 = vunpack.c.0.s8 %v1532
    %v1534 = vlaneseq
    %v1535 = vshrl.u32 %v1534, 7
    %v1536 = vsub.s32 %v1533, %v1535
    %v1537 = vrot.slane %v1523, %v1536
    %v1538 = vcombine.low %v1530, %v1537
    %v1540 = vunpack.c.l.s4 1966171168
    %v1541 = vunpack.c.0.s8 %v1540
    %v1542 = vlaneseq
    %v1543 = vshrl.u32 %v1542, 7
    %v1544 = vsub.s32 %v1541, %v1543
    %v1545 = vrot.slane %v1538, %v1544
    %v1547 = vadd.f32 %v1375, %v1545
    %v1548 = vxor.u32 %v1547, 2147483648
    %v1549 = vmul.f32 %v1548, 1.442695
    %v1550 = vpow.pop %v1549
    %v1551 = vadd.f32 %v1550, 1.0
    %v1552 = vrcp.pop %v1551
    %v1553 = vmul.f32 1.0, %v1552
    %v1555 = vrot.slane %v1547, 1
    %v1557 = vxor.u32 %v1555, 2147483648
    %v1558 = vmul.f32 %v1557, 1.442695
    %v1559 = vpow.pop %v1558
    %v1560 = vadd.f32 %v1559, 1.0
    %v1561 = vrcp.pop %v1560
    %v1562 = vmul.f32 1.0, %v1561
    %v1563 = vrot.slane %v1547, 2
    %v1565 = vtanh.pop %v1563
    %v1566 = vrot.slane %v1547, 3
    %v1568 = vxor.u32 %v1566, 2147483648
    %v1569 = vmul.f32 %v1568, 1.442695
    %v1570 = vpow.pop %v1569
    %v1571 = vadd.f32 %v1570, 1.0
    %v1572 = vrcp.pop %v1571
    %v1573 = vmul.f32 1.0, %v1572
    %v1574 = vmul.f32 %v1371, %v1553
    %v1575 = vmul.f32 %v1565, %v1562
    %v1576 = vadd.f32 %v1574, %v1575
    %v1577 = vtanh.pop %v1576
    %v1578 = vmul.f32 %v1577, %v1573
    %s1579 = scalar_lea.vmem [#allocation2], 6
    %v1580 = vld [vmem:[%s1579] ss:$8 sm:$0xf]
    %1581 = vmatprep.subr.mxu0 %v345
    %1582 = vmatpush1.msra.mxu0 %v344
    %1583 = vmatprep.subr.mxu0 %v341
    %1584 = vmatpush1.msra.mxu0 %v340
    %1585 = vmatprep.subr.mxu0 %v337
    %1586 = vmatpush1.msra.mxu0 %v336
    %1587 = vmatprep.subr.mxu0 %v333
    %1588 = vmatpush1.msra.mxu0 %v332
    %1589 = vmatprep.subr.mxu0 %v329
    %1590 = vmatpush1.msra.mxu0 %v328
    %1591 = vmatprep.subr.mxu0 %v325
    %1592 = vmatpush1.msra.mxu0 %v324
    %1593 = vmatprep.subr.mxu0 %v321
    %1594 = vmatpush1.msra.mxu0 %v320
    %1595 = vmatprep.subr.mxu0 %v317
    %1596 = vmatpush1.msra.mxu0 %v316
    %1597 = vmatprep.subr.mxu0 %v313
    %1598 = vmatpush1.msra.mxu0 %v312
    %1599 = vmatprep.subr.mxu0 %v309
    %1600 = vmatpush1.msra.mxu0 %v308
    %1601 = vmatprep.subr.mxu0 %v305
    %1602 = vmatpush1.msra.mxu0 %v304
    %1603 = vmatprep.subr.mxu0 %v301
    %1604 = vmatpush1.msra.mxu0 %v300
    %1605 = vmatprep.subr.mxu0 %v297
    %1606 = vmatpush1.msra.mxu0 %v296
    %1607 = vmatprep.subr.mxu0 %v293
    %1608 = vmatpush1.msra.mxu0 %v292
    %1609 = vmatprep.subr.mxu0 %v289
    %1610 = vmatpush1.msra.mxu0 %v288
    %1611 = vmatprep.subr.mxu0 %v285
    %1612 = vmatpush1.msra.mxu0 %v284
    %1613 = vmatprep.subr.mxu0 0.0
    %1614 = vmatpush2.msra.mxu0 0.0
    %1615 = vmatprep.subr.mxu0 0.0
    %1616 = vmatpush2.msra.mxu0 0.0
    %1617 = vmatprep.subr.mxu0 0.0
    %1618 = vmatpush2.msra.mxu0 0.0
    %1619 = vmatprep.subr.mxu0 0.0
    %1620 = vmatpush2.msra.mxu0 0.0
    %1621 = vmatprep.subr.mxu0 0.0
    %1622 = vmatpush2.msra.mxu0 0.0
    %1623 = vmatprep.subr.mxu0 0.0
    %1624 = vmatpush2.msra.mxu0 0.0
    %1625 = vmatprep.subr.mxu0 0.0
    %1626 = vmatpush2.msra.mxu0 0.0
    %1627 = vmatprep.subr.mxu0 0.0
    %1628 = vmatpush2.msra.mxu0 0.0
    %1629 = vmatprep.subr.mxu0 0.0
    %1630 = vmatpush2.msra.mxu0 0.0
    %1631 = vmatprep.subr.mxu0 0.0
    %1632 = vmatpush2.msra.mxu0 0.0
    %1633 = vmatprep.subr.mxu0 0.0
    %1634 = vmatpush2.msra.mxu0 0.0
    %1635 = vmatprep.subr.mxu0 0.0
    %1636 = vmatpush2.msra.mxu0 0.0
    %1637 = vmatprep.subr.mxu0 0.0
    %1638 = vmatpush2.msra.mxu0 0.0
    %1639 = vmatprep.subr.mxu0 0.0
    %1640 = vmatpush2.msra.mxu0 0.0
    %1641 = vmatprep.subr.mxu0 0.0
    %1642 = vmatpush2.msra.mxu0 0.0
    %1643 = vmatprep.subr.mxu0 0.0
    %1644 = vmatpush2.msra.mxu0 0.0
    %1645 = vmatprep.mubr.f32.mxu0 0.0
    %1646 = vmatmul.mubr.f32.gmra.mxu0 %v1578
    %v1647 = vpop.f32.mrf.mxu0
    %v1648 = vadd.f32 0.0, %v1647
    %v1649 = vpop.f32.mrf.mxu0
    %v1650 = vadd.f32 0.0, %v1649
    %1651 = vdwg.mxu0
    %1652 = vmatprep.subr.mxu0 %v347
    %1653 = vmatpush1.msra.mxu0 %v346
    %1654 = vmatprep.subr.mxu0 %v343
    %1655 = vmatpush1.msra.mxu0 %v342
    %1656 = vmatprep.subr.mxu0 %v339
    %1657 = vmatpush1.msra.mxu0 %v338
    %1658 = vmatprep.subr.mxu0 %v335
    %1659 = vmatpush1.msra.mxu0 %v334
    %1660 = vmatprep.subr.mxu0 %v331
    %1661 = vmatpush1.msra.mxu0 %v330
    %1662 = vmatprep.subr.mxu0 %v327
    %1663 = vmatpush1.msra.mxu0 %v326
    %1664 = vmatprep.subr.mxu0 %v323
    %1665 = vmatpush1.msra.mxu0 %v322
    %1666 = vmatprep.subr.mxu0 %v319
    %1667 = vmatpush1.msra.mxu0 %v318
    %1668 = vmatprep.subr.mxu0 %v315
    %1669 = vmatpush1.msra.mxu0 %v314
    %1670 = vmatprep.subr.mxu0 %v311
    %1671 = vmatpush1.msra.mxu0 %v310
    %1672 = vmatprep.subr.mxu0 %v307
    %1673 = vmatpush1.msra.mxu0 %v306
    %1674 = vmatprep.subr.mxu0 %v303
    %1675 = vmatpush1.msra.mxu0 %v302
    %1676 = vmatprep.subr.mxu0 %v299
    %1677 = vmatpush1.msra.mxu0 %v298
    %1678 = vmatprep.subr.mxu0 %v295
    %1679 = vmatpush1.msra.mxu0 %v294
    %1680 = vmatprep.subr.mxu0 %v291
    %1681 = vmatpush1.msra.mxu0 %v290
    %1682 = vmatprep.subr.mxu0 %v287
    %1683 = vmatpush1.msra.mxu0 %v286
    %1684 = vmatprep.subr.mxu0 0.0
    %1685 = vmatpush2.msra.mxu0 0.0
    %1686 = vmatprep.subr.mxu0 0.0
    %1687 = vmatpush2.msra.mxu0 0.0
    %1688 = vmatprep.subr.mxu0 0.0
    %1689 = vmatpush2.msra.mxu0 0.0
    %1690 = vmatprep.subr.mxu0 0.0
    %1691 = vmatpush2.msra.mxu0 0.0
    %1692 = vmatprep.subr.mxu0 0.0
    %1693 = vmatpush2.msra.mxu0 0.0
    %1694 = vmatprep.subr.mxu0 0.0
    %1695 = vmatpush2.msra.mxu0 0.0
    %1696 = vmatprep.subr.mxu0 0.0
    %1697 = vmatpush2.msra.mxu0 0.0
    %1698 = vmatprep.subr.mxu0 0.0
    %1699 = vmatpush2.msra.mxu0 0.0
    %1700 = vmatprep.subr.mxu0 0.0
    %1701 = vmatpush2.msra.mxu0 0.0
    %1702 = vmatprep.subr.mxu0 0.0
    %1703 = vmatpush2.msra.mxu0 0.0
    %1704 = vmatprep.subr.mxu0 0.0
    %1705 = vmatpush2.msra.mxu0 0.0
    %1706 = vmatprep.subr.mxu0 0.0
    %1707 = vmatpush2.msra.mxu0 0.0
    %1708 = vmatprep.subr.mxu0 0.0
    %1709 = vmatpush2.msra.mxu0 0.0
    %1710 = vmatprep.subr.mxu0 0.0
    %1711 = vmatpush2.msra.mxu0 0.0
    %1712 = vmatprep.subr.mxu0 0.0
    %1713 = vmatpush2.msra.mxu0 0.0
    %1714 = vmatprep.subr.mxu0 0.0
    %1715 = vmatpush2.msra.mxu0 0.0
    %1716 = vmatprep.mubr.f32.mxu0 0.0
    %1717 = vmatmul.mubr.f32.gmra.mxu0 %v1578
    %v1718 = vpop.f32.mrf.mxu0
    %v1719 = vadd.f32 0.0, %v1718
    %v1720 = vpop.f32.mrf.mxu0
    %v1721 = vadd.f32 0.0, %v1720
    %1722 = vdwg.mxu0
    %v1727 = vcombine.low %v1648, %v1650
    %v1728 = vcombine.low %v1719, %v1721
    %v1730 = vunpack.c.l.s4 1966171168
    %v1731 = vunpack.c.0.s8 %v1730
    %v1732 = vlaneseq
    %v1733 = vshrl.u32 %v1732, 7
    %v1734 = vsub.s32 %v1731, %v1733
    %v1735 = vrot.slane %v1727, %v1734
    %v1737 = vunpack.c.l.s4 1966171168
    %v1738 = vunpack.c.0.s8 %v1737
    %v1739 = vlaneseq
    %v1740 = vshrl.u32 %v1739, 7
    %v1741 = vsub.s32 %v1738, %v1740
    %v1742 = vrot.slane %v1728, %v1741
    %v1743 = vcombine.low %v1735, %v1742
    %v1745 = vunpack.c.l.s4 1966171168
    %v1746 = vunpack.c.0.s8 %v1745
    %v1747 = vlaneseq
    %v1748 = vshrl.u32 %v1747, 7
    %v1749 = vsub.s32 %v1746, %v1748
    %v1750 = vrot.slane %v1743, %v1749
    %v1752 = vadd.f32 %v1580, %v1750
    %v1753 = vxor.u32 %v1752, 2147483648
    %v1754 = vmul.f32 %v1753, 1.442695
    %v1755 = vpow.pop %v1754
    %v1756 = vadd.f32 %v1755, 1.0
    %v1757 = vrcp.pop %v1756
    %v1758 = vmul.f32 1.0, %v1757
    %v1760 = vrot.slane %v1752, 1
    %v1762 = vxor.u32 %v1760, 2147483648
    %v1763 = vmul.f32 %v1762, 1.442695
    %v1764 = vpow.pop %v1763
    %v1765 = vadd.f32 %v1764, 1.0
    %v1766 = vrcp.pop %v1765
    %v1767 = vmul.f32 1.0, %v1766
    %v1768 = vrot.slane %v1752, 2
    %v1770 = vtanh.pop %v1768
    %v1771 = vrot.slane %v1752, 3
    %v1773 = vxor.u32 %v1771, 2147483648
    %v1774 = vmul.f32 %v1773, 1.442695
    %v1775 = vpow.pop %v1774
    %v1776 = vadd.f32 %v1775, 1.0
    %v1777 = vrcp.pop %v1776
    %v1778 = vmul.f32 1.0, %v1777
    %v1779 = vmul.f32 %v1576, %v1758
    %v1780 = vmul.f32 %v1770, %v1767
    %v1781 = vadd.f32 %v1779, %v1780
    %v1782 = vtanh.pop %v1781
    %v1783 = vmul.f32 %v1782, %v1778
    %s1784 = scalar_lea.vmem [#allocation2], 7
    %v1785 = vld [vmem:[%s1784] ss:$8 sm:$0xf]
    %1786 = vmatprep.subr.mxu0 %v345
    %1787 = vmatpush1.msra.mxu0 %v344
    %1788 = vmatprep.subr.mxu0 %v341
    %1789 = vmatpush1.msra.mxu0 %v340
    %1790 = vmatprep.subr.mxu0 %v337
    %1791 = vmatpush1.msra.mxu0 %v336
    %1792 = vmatprep.subr.mxu0 %v333
    %1793 = vmatpush1.msra.mxu0 %v332
    %1794 = vmatprep.subr.mxu0 %v329
    %1795 = vmatpush1.msra.mxu0 %v328
    %1796 = vmatprep.subr.mxu0 %v325
    %1797 = vmatpush1.msra.mxu0 %v324
    %1798 = vmatprep.subr.mxu0 %v321
    %1799 = vmatpush1.msra.mxu0 %v320
    %1800 = vmatprep.subr.mxu0 %v317
    %1801 = vmatpush1.msra.mxu0 %v316
    %1802 = vmatprep.subr.mxu0 %v313
    %1803 = vmatpush1.msra.mxu0 %v312
    %1804 = vmatprep.subr.mxu0 %v309
    %1805 = vmatpush1.msra.mxu0 %v308
    %1806 = vmatprep.subr.mxu0 %v305
    %1807 = vmatpush1.msra.mxu0 %v304
    %1808 = vmatprep.subr.mxu0 %v301
    %1809 = vmatpush1.msra.mxu0 %v300
    %1810 = vmatprep.subr.mxu0 %v297
    %1811 = vmatpush1.msra.mxu0 %v296
    %1812 = vmatprep.subr.mxu0 %v293
    %1813 = vmatpush1.msra.mxu0 %v292
    %1814 = vmatprep.subr.mxu0 %v289
    %1815 = vmatpush1.msra.mxu0 %v288
    %1816 = vmatprep.subr.mxu0 %v285
    %1817 = vmatpush1.msra.mxu0 %v284
    %1818 = vmatprep.subr.mxu0 0.0
    %1819 = vmatpush2.msra.mxu0 0.0
    %1820 = vmatprep.subr.mxu0 0.0
    %1821 = vmatpush2.msra.mxu0 0.0
    %1822 = vmatprep.subr.mxu0 0.0
    %1823 = vmatpush2.msra.mxu0 0.0
    %1824 = vmatprep.subr.mxu0 0.0
    %1825 = vmatpush2.msra.mxu0 0.0
    %1826 = vmatprep.subr.mxu0 0.0
    %1827 = vmatpush2.msra.mxu0 0.0
    %1828 = vmatprep.subr.mxu0 0.0
    %1829 = vmatpush2.msra.mxu0 0.0
    %1830 = vmatprep.subr.mxu0 0.0
    %1831 = vmatpush2.msra.mxu0 0.0
    %1832 = vmatprep.subr.mxu0 0.0
    %1833 = vmatpush2.msra.mxu0 0.0
    %1834 = vmatprep.subr.mxu0 0.0
    %1835 = vmatpush2.msra.mxu0 0.0
    %1836 = vmatprep.subr.mxu0 0.0
    %1837 = vmatpush2.msra.mxu0 0.0
    %1838 = vmatprep.subr.mxu0 0.0
    %1839 = vmatpush2.msra.mxu0 0.0
    %1840 = vmatprep.subr.mxu0 0.0
    %1841 = vmatpush2.msra.mxu0 0.0
    %1842 = vmatprep.subr.mxu0 0.0
    %1843 = vmatpush2.msra.mxu0 0.0
    %1844 = vmatprep.subr.mxu0 0.0
    %1845 = vmatpush2.msra.mxu0 0.0
    %1846 = vmatprep.subr.mxu0 0.0
    %1847 = vmatpush2.msra.mxu0 0.0
    %1848 = vmatprep.subr.mxu0 0.0
    %1849 = vmatpush2.msra.mxu0 0.0
    %1850 = vmatprep.mubr.f32.mxu0 0.0
    %1851 = vmatmul.mubr.f32.gmra.mxu0 %v1783
    %v1852 = vpop.f32.mrf.mxu0
    %v1853 = vadd.f32 0.0, %v1852
    %v1854 = vpop.f32.mrf.mxu0
    %v1855 = vadd.f32 0.0, %v1854
    %1856 = vdwg.mxu0
    %1857 = vmatprep.subr.mxu0 %v347
    %1858 = vmatpush1.msra.mxu0 %v346
    %1859 = vmatprep.subr.mxu0 %v343
    %1860 = vmatpush1.msra.mxu0 %v342
    %1861 = vmatprep.subr.mxu0 %v339
    %1862 = vmatpush1.msra.mxu0 %v338
    %1863 = vmatprep.subr.mxu0 %v335
    %1864 = vmatpush1.msra.mxu0 %v334
    %1865 = vmatprep.subr.mxu0 %v331
    %1866 = vmatpush1.msra.mxu0 %v330
    %1867 = vmatprep.subr.mxu0 %v327
    %1868 = vmatpush1.msra.mxu0 %v326
    %1869 = vmatprep.subr.mxu0 %v323
    %1870 = vmatpush1.msra.mxu0 %v322
    %1871 = vmatprep.subr.mxu0 %v319
    %1872 = vmatpush1.msra.mxu0 %v318
    %1873 = vmatprep.subr.mxu0 %v315
    %1874 = vmatpush1.msra.mxu0 %v314
    %1875 = vmatprep.subr.mxu0 %v311
    %1876 = vmatpush1.msra.mxu0 %v310
    %1877 = vmatprep.subr.mxu0 %v307
    %1878 = vmatpush1.msra.mxu0 %v306
    %1879 = vmatprep.subr.mxu0 %v303
    %1880 = vmatpush1.msra.mxu0 %v302
    %1881 = vmatprep.subr.mxu0 %v299
    %1882 = vmatpush1.msra.mxu0 %v298
    %1883 = vmatprep.subr.mxu0 %v295
    %1884 = vmatpush1.msra.mxu0 %v294
    %1885 = vmatprep.subr.mxu0 %v291
    %1886 = vmatpush1.msra.mxu0 %v290
    %1887 = vmatprep.subr.mxu0 %v287
    %1888 = vmatpush1.msra.mxu0 %v286
    %1889 = vmatprep.subr.mxu0 0.0
    %1890 = vmatpush2.msra.mxu0 0.0
    %1891 = vmatprep.subr.mxu0 0.0
    %1892 = vmatpush2.msra.mxu0 0.0
    %1893 = vmatprep.subr.mxu0 0.0
    %1894 = vmatpush2.msra.mxu0 0.0
    %1895 = vmatprep.subr.mxu0 0.0
    %1896 = vmatpush2.msra.mxu0 0.0
    %1897 = vmatprep.subr.mxu0 0.0
    %1898 = vmatpush2.msra.mxu0 0.0
    %1899 = vmatprep.subr.mxu0 0.0
    %1900 = vmatpush2.msra.mxu0 0.0
    %1901 = vmatprep.subr.mxu0 0.0
    %1902 = vmatpush2.msra.mxu0 0.0
    %1903 = vmatprep.subr.mxu0 0.0
    %1904 = vmatpush2.msra.mxu0 0.0
    %1905 = vmatprep.subr.mxu0 0.0
    %1906 = vmatpush2.msra.mxu0 0.0
    %1907 = vmatprep.subr.mxu0 0.0
    %1908 = vmatpush2.msra.mxu0 0.0
    %1909 = vmatprep.subr.mxu0 0.0
    %1910 = vmatpush2.msra.mxu0 0.0
    %1911 = vmatprep.subr.mxu0 0.0
    %1912 = vmatpush2.msra.mxu0 0.0
    %1913 = vmatprep.subr.mxu0 0.0
    %1914 = vmatpush2.msra.mxu0 0.0
    %1915 = vmatprep.subr.mxu0 0.0
    %1916 = vmatpush2.msra.mxu0 0.0
    %1917 = vmatprep.subr.mxu0 0.0
    %1918 = vmatpush2.msra.mxu0 0.0
    %1919 = vmatprep.subr.mxu0 0.0
    %1920 = vmatpush2.msra.mxu0 0.0
    %1921 = vmatprep.mubr.f32.mxu0 0.0
    %1922 = vmatmul.mubr.f32.gmra.mxu0 %v1783
    %v1923 = vpop.f32.mrf.mxu0
    %v1924 = vadd.f32 0.0, %v1923
    %v1925 = vpop.f32.mrf.mxu0
    %v1926 = vadd.f32 0.0, %v1925
    %1927 = vdwg.mxu0
    %v1932 = vcombine.low %v1853, %v1855
    %v1933 = vcombine.low %v1924, %v1926
    %v1935 = vunpack.c.l.s4 1966171168
    %v1936 = vunpack.c.0.s8 %v1935
    %v1937 = vlaneseq
    %v1938 = vshrl.u32 %v1937, 7
    %v1939 = vsub.s32 %v1936, %v1938
    %v1940 = vrot.slane %v1932, %v1939
    %v1942 = vunpack.c.l.s4 1966171168
    %v1943 = vunpack.c.0.s8 %v1942
    %v1944 = vlaneseq
    %v1945 = vshrl.u32 %v1944, 7
    %v1946 = vsub.s32 %v1943, %v1945
    %v1947 = vrot.slane %v1933, %v1946
    %v1948 = vcombine.low %v1940, %v1947
    %v1950 = vunpack.c.l.s4 1966171168
    %v1951 = vunpack.c.0.s8 %v1950
    %v1952 = vlaneseq
    %v1953 = vshrl.u32 %v1952, 7
    %v1954 = vsub.s32 %v1951, %v1953
    %v1955 = vrot.slane %v1948, %v1954
    %v1957 = vadd.f32 %v1785, %v1955
    %v1958 = vxor.u32 %v1957, 2147483648
    %v1959 = vmul.f32 %v1958, 1.442695
    %v1960 = vpow.pop %v1959
    %v1961 = vadd.f32 %v1960, 1.0
    %v1962 = vrcp.pop %v1961
    %v1963 = vmul.f32 1.0, %v1962
    %v1965 = vrot.slane %v1957, 1
    %v1967 = vxor.u32 %v1965, 2147483648
    %v1968 = vmul.f32 %v1967, 1.442695
    %v1969 = vpow.pop %v1968
    %v1970 = vadd.f32 %v1969, 1.0
    %v1971 = vrcp.pop %v1970
    %v1972 = vmul.f32 1.0, %v1971
    %v1973 = vrot.slane %v1957, 2
    %v1975 = vtanh.pop %v1973
    %v1976 = vrot.slane %v1957, 3
    %v1978 = vxor.u32 %v1976, 2147483648
    %v1979 = vmul.f32 %v1978, 1.442695
    %v1980 = vpow.pop %v1979
    %v1981 = vadd.f32 %v1980, 1.0
    %v1982 = vrcp.pop %v1981
    %v1983 = vmul.f32 1.0, %v1982
    %v1984 = vmul.f32 %v1781, %v1963
    %v1985 = vmul.f32 %v1975, %v1972
    %v1986 = vadd.f32 %v1984, %v1985
    %v1987 = vtanh.pop %v1986
    %v1988 = vmul.f32 %v1987, %v1983
    %1989 = vst [vmem:[#allocation8] sm:$0x1] %v1988
    %1990 = vst [vmem:[#allocation9] sm:$0x1] %v1986
    %v1991 = vld [vmem:[%s6] sm:$0xff]
    %v1992 = vld [vmem:[%s6 + $0x8] sm:$0xff]
    %v1993 = vld [vmem:[%s6 + $0x10] sm:$0xff]
    %v1994 = vld [vmem:[%s6 + $0x18] sm:$0xff]
    %v1995 = vld [vmem:[%s6 + $0x20] sm:$0xff]
    %v1996 = vld [vmem:[%s6 + $0x28] sm:$0xff]
    %v1997 = vld [vmem:[%s6 + $0x30] sm:$0xff]
    %v1998 = vld [vmem:[%s6 + $0x38] sm:$0xff]
    %v1999 = vld [vmem:[%s6 + $0x40] sm:$0xff]
    %v2000 = vld [vmem:[%s6 + $0x48] sm:$0xff]
    %v2001 = vld [vmem:[%s6 + $0x50] sm:$0xff]
    %v2002 = vld [vmem:[%s6 + $0x58] sm:$0xff]
    %v2003 = vld [vmem:[%s6 + $0x60] sm:$0xff]
    %v2004 = vld [vmem:[%s6 + $0x68] sm:$0xff]
    %v2005 = vld [vmem:[%s6 + $0x70] sm:$0xff]
    %v2006 = vld [vmem:[%s6 + $0x78] sm:$0xff]
    %v2007 = vld [vmem:[%s7] sm:$0x1]
    %2008 = vmatprep.subr.mxu0 0.0
    %2009 = vmatpush1.msra.mxu0 %v2006
    %2010 = vmatprep.subr.mxu0 0.0
    %2011 = vmatpush1.msra.mxu0 %v2005
    %2012 = vmatprep.subr.mxu0 0.0
    %2013 = vmatpush1.msra.mxu0 %v2004
    %2014 = vmatprep.subr.mxu0 0.0
    %2015 = vmatpush1.msra.mxu0 %v2003
    %2016 = vmatprep.subr.mxu0 0.0
    %2017 = vmatpush1.msra.mxu0 %v2002
    %2018 = vmatprep.subr.mxu0 0.0
    %2019 = vmatpush1.msra.mxu0 %v2001
    %2020 = vmatprep.subr.mxu0 0.0
    %2021 = vmatpush1.msra.mxu0 %v2000
    %2022 = vmatprep.subr.mxu0 0.0
    %2023 = vmatpush1.msra.mxu0 %v1999
    %2024 = vmatprep.subr.mxu0 0.0
    %2025 = vmatpush1.msra.mxu0 %v1998
    %2026 = vmatprep.subr.mxu0 0.0
    %2027 = vmatpush1.msra.mxu0 %v1997
    %2028 = vmatprep.subr.mxu0 0.0
    %2029 = vmatpush1.msra.mxu0 %v1996
    %2030 = vmatprep.subr.mxu0 0.0
    %2031 = vmatpush1.msra.mxu0 %v1995
    %2032 = vmatprep.subr.mxu0 0.0
    %2033 = vmatpush1.msra.mxu0 %v1994
    %2034 = vmatprep.subr.mxu0 0.0
    %2035 = vmatpush1.msra.mxu0 %v1993
    %2036 = vmatprep.subr.mxu0 0.0
    %2037 = vmatpush1.msra.mxu0 %v1992
    %2038 = vmatprep.subr.mxu0 0.0
    %2039 = vmatpush1.msra.mxu0 %v1991
    %2040 = vmatprep.subr.mxu0 0.0
    %2041 = vmatpush2.msra.mxu0 0.0
    %2042 = vmatprep.subr.mxu0 0.0
    %2043 = vmatpush2.msra.mxu0 0.0
    %2044 = vmatprep.subr.mxu0 0.0
    %2045 = vmatpush2.msra.mxu0 0.0
    %2046 = vmatprep.subr.mxu0 0.0
    %2047 = vmatpush2.msra.mxu0 0.0
    %2048 = vmatprep.subr.mxu0 0.0
    %2049 = vmatpush2.msra.mxu0 0.0
    %2050 = vmatprep.subr.mxu0 0.0
    %2051 = vmatpush2.msra.mxu0 0.0
    %2052 = vmatprep.subr.mxu0 0.0
    %2053 = vmatpush2.msra.mxu0 0.0
    %2054 = vmatprep.subr.mxu0 0.0
    %2055 = vmatpush2.msra.mxu0 0.0
    %2056 = vmatprep.subr.mxu0 0.0
    %2057 = vmatpush2.msra.mxu0 0.0
    %2058 = vmatprep.subr.mxu0 0.0
    %2059 = vmatpush2.msra.mxu0 0.0
    %2060 = vmatprep.subr.mxu0 0.0
    %2061 = vmatpush2.msra.mxu0 0.0
    %2062 = vmatprep.subr.mxu0 0.0
    %2063 = vmatpush2.msra.mxu0 0.0
    %2064 = vmatprep.subr.mxu0 0.0
    %2065 = vmatpush2.msra.mxu0 0.0
    %2066 = vmatprep.subr.mxu0 0.0
    %2067 = vmatpush2.msra.mxu0 0.0
    %2068 = vmatprep.subr.mxu0 0.0
    %2069 = vmatpush2.msra.mxu0 0.0
    %2070 = vmatprep.subr.mxu0 0.0
    %2071 = vmatpush2.msra.mxu0 0.0
    %2072 = vmatprep.mubr.f32.mxu0 0.0
    %2073 = vmatmul.mubr.f32.gmra.mxu0 %v1988
    %v2074 = vpop.f32.mrf.mxu0
    %v2075 = vadd.f32 %v2007, %v2074
    %v2076 = vpop.f32.mrf.mxu0
    %2077 = vdwg.mxu0
    %vm2078 = vcmask 524288
    %v2079 = vsel %vm2078, %v2075, -inf
    %2080 = vmax.xlane.f32.xlu0 %v2079
    %v2081 = vpop.xlane.xlu0 %2080
    %v2082 = vsub.f32 %v2075, %v2081
    %v2083 = vmul.f32 %v2082, 1.442695
    %v2084 = vpow.pop %v2083
    %v2085 = vsel %vm2078, %v2084, 0.0
    %2086 = vadd.xlane.f32.xlu0 %v2085
    %v2087 = vpop.xlane.xlu0 %2086
    %v2088 = vrcp.pop %v2087
    %v2089 = vmul.f32 %v2084, %v2088
    %2090 = vst.msk [vmem:[#allocation11] sm:$0x1] %vm2078, %v2089
    // Predicated region
    $region42: #{tpu_custom_call.1} parent=1 // pred_check
      _
    $region43: #{tpu_custom_call.1} parent=1 // pred_check_branch
      %2092 = sbr.rel (0) target = $region45
    $region44: #{tpu_custom_call.1} parent=1 // pred_region
      %s2094 = ssub.s32 16, 16
      %2095 = vsyncadd [#allocation5], %s2094
      %s2097 = sshll.u32 [#allocation8], 4
      %s2098 = int_to_ptr.vmem [resolvable:$true] %s2097
      %2100 = dma.vmem_to_hbm [thread:$0]  %s2098, 16, %s8, [#allocation5]
    $region45: #{tpu_custom_call.1} parent=1 // pred_fallthru
      _
    // Predicated region
    $region46: #{tpu_custom_call.1} parent=1 // pred_check
      _
    $region47: #{tpu_custom_call.1} parent=1 // pred_check_branch
      %2102 = sbr.rel (0) target = $region49
    $region48: #{tpu_custom_call.1} parent=1 // pred_region
      %s2104 = ssub.s32 16, 16
      %2105 = vsyncadd [#allocation10], %s2104
      %s2107 = sshll.u32 [#allocation9], 4
      %s2108 = int_to_ptr.vmem [resolvable:$true] %s2107
      %2110 = dma.vmem_to_hbm [thread:$0]  %s2108, 16, %s9, [#allocation10]
    $region49: #{tpu_custom_call.1} parent=1 // pred_fallthru
      _
    // Predicated region
    $region50: #{tpu_custom_call.1} parent=1 // pred_check
      _
    $region51: #{tpu_custom_call.1} parent=1 // pred_check_branch
      %2112 = sbr.rel (0) target = $region53
    $region52: #{tpu_custom_call.1} parent=1 // pred_region
      %s2114 = ssub.s32 16, 16
      %2115 = vsyncadd [#allocation10], %s2114
      %s2117 = sshll.u32 [#allocation11], 4
      %s2118 = int_to_ptr.vmem [resolvable:$true] %s2117
      %2120 = dma.vmem_to_hbm [thread:$0]  %s2118, 16, %s10, [#allocation10]
    $region53: #{tpu_custom_call.1} parent=1 // pred_fallthru
      _
    // Predicated region
    $region54: #{tpu_custom_call.1} parent=1 // pred_check
      _
    $region55: #{tpu_custom_call.1} parent=1 // pred_check_branch
      %2122 = sbr.rel (0) target = $region57
    $region56: #{tpu_custom_call.1} parent=1 // pred_region
      %2123 = dma.done [#allocation5], 16
    $region57: #{tpu_custom_call.1} parent=1 // pred_fallthru
      _
    // Predicated region
    $region58: #{tpu_custom_call.1} parent=1 // pred_check
      _
    $region59: #{tpu_custom_call.1} parent=1 // pred_check_branch
      %2125 = sbr.rel (0) target = $region61
    $region60: #{tpu_custom_call.1} parent=1 // pred_region
      %2126 = dma.done [#allocation10], 16
    $region61: #{tpu_custom_call.1} parent=1 // pred_fallthru
      _
    // Predicated region
    $region62: #{tpu_custom_call.1} parent=1 // pred_check
      _
    $region63: #{tpu_custom_call.1} parent=1 // pred_check_branch
      %2128 = sbr.rel (0) target = $region65
    $region64: #{tpu_custom_call.1} parent=1 // pred_region
      %2129 = dma.done [#allocation10], 16
    $region65: #{tpu_custom_call.1} parent=1 // pred_fallthru
      _
    %2130 = vsyncpa [#allocation4], 1
    %2131 = vsyncpa [#allocation7], 1
    %2132 = vsyncpa [#allocation5], 1
    %2133 = vsyncpa [#allocation10], 1

</llo_original>
